<compile_context>
chip_gen: v7x
topology: tpu7x:2x2x1
jax: 0.10.0
libtpu: 0.0.40
codegen_flags: <defaults>
</compile_context>

<pallas_src>
import math

import jax
import jax.numpy as jnp
from jax.experimental import pallas as pl
from jax.experimental.pallas import tpu as pltpu

_VMEM_LIMIT = 32 * 1024 * 1024


def _round_up(x, m):
    return ((x + m - 1) // m) * m


# ----------------------------------------------------------------------------
# Kernel 1: lane-dense transposed affine map  y = Wt @ Xt + b[:, None]
# (fused encoder -> decoder -> output-head mask columns; output (n_cls, M))
# ----------------------------------------------------------------------------
def _affine_t_kernel(w_ref, x_ref, b_ref, o_ref):
    acc = jnp.dot(w_ref[...], x_ref[...], preferred_element_type=jnp.float32)
    o_ref[...] = (acc + b_ref[...]).astype(o_ref.dtype)


def pallas_affine_t(w_t, x_t, b, tn=512):
    """y = w_t @ x_t + b[:, None]; columns padded to the lane tile -> real grid."""
    n_out, K = w_t.shape
    _, M = x_t.shape
    tn = min(tn, _round_up(M, 128))        # lane tile, multiple of 128
    m_pad = _round_up(M, tn)
    if m_pad != M:
        x_t = jnp.pad(x_t, ((0, 0), (0, m_pad - M)))
    out = pl.pallas_call(
        _affine_t_kernel,
        out_shape=jax.ShapeDtypeStruct((n_out, m_pad), x_t.dtype),
        grid_spec=pltpu.PrefetchScalarGridSpec(
            num_scalar_prefetch=0,
            grid=(m_pad // tn,),
            in_specs=[
                pl.BlockSpec((n_out, K), lambda i: (0, 0)),
                pl.BlockSpec((K, tn), lambda i: (0, i)),
                pl.BlockSpec((n_out, 1), lambda i: (0, 0)),
            ],
            out_specs=pl.BlockSpec((n_out, tn), lambda i: (0, i)),
        ),
        compiler_params=pltpu.CompilerParams(
            dimension_semantics=("parallel",),
            vmem_limit_bytes=_VMEM_LIMIT),
    )(w_t, x_t, b.reshape(n_out, 1))
    return out[:, :M] if m_pad != M else out


# ----------------------------------------------------------------------------
# Kernel 2: fused output head (channel-major, NCDHW in / NCDHW out)
#   out[n,d,h,w] = sum_k Pw[w,k] * mproj_dh[n,d,h,k]        (W interp, MXU)
#               + sum_i Wi[i,n]  * im[i,d,h,w]              (VPU FMAs)
#               + b[n]
# ----------------------------------------------------------------------------
def _head_kernel(m_ref, pwt_ref, im_ref, wi_ref, b_ref, o_ref):
    # m_ref  : (n_cls, td, H, nW)  VMEM  (D/H-interpolated mask projection)
    # pwt_ref: (nW, W)             VMEM  (width interpolation matrix, transposed)
    # im_ref : (C, td, H, W)       VMEM  (input volume slab, channel-major)
    # wi_ref : (C, n_cls)          SMEM  (output-head weights for im channels)
    # b_ref  : (1, n_cls)          SMEM  (output-head bias)
    # o_ref  : (n_cls, td, H, W)   VMEM
    n_cls, td, H, _ = m_ref.shape
    C = im_ref.shape[0]
    W = pwt_ref.shape[1]
    pwt = pwt_ref[...]

    # One class at a time: keeps the live intermediate at (td, H, W).
    for n in range(n_cls):
        flat = m_ref[n].reshape(td * H, m_ref.shape[3])
        up_n = jnp.dot(flat, pwt, preferred_element_type=jnp.float32)
        acc = up_n.reshape(td, H, W) + b_ref[0, n]
        # im contribution: C unrolled broadcast-FMAs (tiny K -> VPU, not MXU).
        for i in range(C):
            acc = acc + wi_ref[i, n] * im_ref[i]
        o_ref[n] = acc.astype(o_ref.dtype)


def pallas_fused_head(mproj_dh, pw_t, im, w_im, b_out, tile_d=8):
    """Fused trilinear W-upsample + concat([masks, im]) @ W_out + b_out."""
    B, C, D, H, W = im.shape
    n_cls = mproj_dh.shape[1]
    nW = mproj_dh.shape[-1]
    if D % tile_d != 0:
        tile_d = D
    m4 = mproj_dh.reshape(B * n_cls, D, H, nW)   # free reshape (adjacent dims)
    im4 = im.reshape(B * C, D, H, W)             # free reshape (adjacent dims)
    out = pl.pallas_call(
        _head_kernel,
        out_shape=jax.ShapeDtypeStruct((B * n_cls, D, H, W), im.dtype),
        grid_spec=pltpu.PrefetchScalarGridSpec(
            num_scalar_prefetch=0,
            grid=(B, D // tile_d),
            in_specs=[
                pl.BlockSpec((n_cls, tile_d, H, nW), lambda b, d: (b, d, 0, 0)),
                pl.BlockSpec((nW, W), lambda b, d: (0, 0)),
                pl.BlockSpec((C, tile_d, H, W), lambda b, d: (b, d, 0, 0)),
                pl.BlockSpec(memory_space=pltpu.MemorySpace.SMEM),
                pl.BlockSpec(memory_space=pltpu.MemorySpace.SMEM),
            ],
            out_specs=pl.BlockSpec((n_cls, tile_d, H, W),
                                   lambda b, d: (b, d, 0, 0)),
        ),
        compiler_params=pltpu.CompilerParams(
            dimension_semantics=("parallel", "parallel"),
            vmem_limit_bytes=_VMEM_LIMIT),
    )(m4, pw_t, im4, w_im, b_out.reshape(1, n_cls))
    return out.reshape(B, n_cls, D, H, W)


# ----------------------------------------------------------------------------
# helpers: padding / unpadding (exact port of the PyTorch helpers, NCDHW) and
# linear-interpolation matrices matching F.interpolate(align_corners=False).
# ----------------------------------------------------------------------------
def padding(im, patch_size, fill_value=0.0):
    D, H, W = im.shape[2], im.shape[3], im.shape[4]
    pad_d = (-D) % patch_size
    pad_h = (-H) % patch_size
    pad_w = (-W) % patch_size
    if pad_d or pad_h or pad_w:
        im = jnp.pad(im, ((0, 0), (0, 0), (0, pad_d), (0, pad_h), (0, pad_w)),
                     constant_values=fill_value)
    return im


def unpadding(y, target_size):
    D, H, W = target_size
    return y[:, :, :D, :H, :W]


def _interp_matrix(out_size, in_size):
    """(out_size, in_size) linear-interp matrix, half-pixel, edge-clamped."""
    idx = jnp.arange(out_size, dtype=jnp.float32)
    src = (idx + 0.5) * (in_size / out_size) - 0.5
    k0 = jnp.floor(src)
    frac = src - k0
    k0 = k0.astype(jnp.int32)
    k0c = jnp.clip(k0, 0, in_size - 1)
    k1c = jnp.clip(k0 + 1, 0, in_size - 1)
    rows = jnp.arange(out_size)
    P = jnp.zeros((out_size, in_size), jnp.float32)
    P = P.at[rows, k0c].add(1.0 - frac)
    P = P.at[rows, k1c].add(frac)
    return P


# ----------------------------------------------------------------------------
# Segmenter
# ----------------------------------------------------------------------------
class SegmenterPallas:
    """JAX/Pallas port of Segmenter.forward.

    The encoder / decoder are external, unspecified nn.Modules in the
    reference; they are replaced by deterministic synthetic stand-ins
    (ViT-style patch embedding + linear mask decoder).  Because both stand-ins
    and the output nn.Linear are affine, encoder @ decoder @ W_out[:n_cls] are
    folded into a single matmul, and the trilinear upsample of the mask
    projection commutes with that linear map.
    """

    def __init__(self, key, *, in_chans=4, n_cls=5, patch_size=4,
                 d_model=32, decoder_n_layers=1):
        self.n_cls = n_cls
        self.in_chans = in_chans
        self.patch_size = patch_size
        self.d_model = d_model
        self.decoder_n_layers = decoder_n_layers
        self.numuplayers = round(math.log2(patch_size))  # unused in forward

        def lin_init(k, fan_in, shape):
            # matches torch nn.Linear default: U(-1/sqrt(fan_in), 1/sqrt(fan_in))
            bound = 1.0 / math.sqrt(fan_in)
            return jax.random.uniform(k, shape, jnp.float32, -bound, bound)

        k1, k2, k3, k4, k5, k6 = jax.random.split(key, 6)
        patch_dim = in_chans * patch_size ** 3
        # encoder: patch embedding
        self.w_embed = lin_init(k1, patch_dim, (patch_dim, d_model))
        self.b_embed = lin_init(k2, patch_dim, (d_model,))
        # decoder: token -> per-patch class logits
        self.w_dec = lin_init(k3, d_model, (d_model, n_cls))
        self.b_dec = lin_init(k4, d_model, (n_cls,))
        # self.output = nn.Linear(n_cls + 4, n_cls); stored as (in, out)
        self.w_out = lin_init(k5, n_cls + in_chans, (n_cls + in_chans, n_cls))
        self.b_out = lin_init(k6, n_cls + in_chans, (n_cls,))

        # Fold encoder, decoder and the mask columns of the output head into a
        # single affine map patches -> per-low-res-voxel head contribution.
        w_mask = self.w_out[:n_cls]                        # (n_cls, n_cls)
        self.w_im = self.w_out[n_cls:]                     # (in_chans, n_cls)
        w_all = self.w_embed @ self.w_dec @ w_mask         # (patch_dim, n_cls)
        self.w_all_t = jnp.transpose(w_all)                # (n_cls, patch_dim)
        self.b_all = (self.b_embed @ self.w_dec + self.b_dec) @ w_mask

    def __call__(self, im):
        D_ori, H_ori, W_ori = im.shape[2], im.shape[3], im.shape[4]
        im = padding(im, self.patch_size * 2 ** (self.decoder_n_layers - 1))
        B, C, D, H, W = im.shape
        ps = self.patch_size
        nD, nH, nW = D // ps, H // ps, W // ps

        # -- patch extraction, already transposed to (patch_dim, tokens) ------
        xt = im.reshape(B, C, nD, ps, nH, ps, nW, ps)
        xt = xt.transpose(1, 3, 5, 7, 0, 2, 4, 6)
        xt = xt.reshape(C * ps ** 3, B * nD * nH * nW)

        # -- fused encoder ∘ decoder ∘ output-head mask columns (Pallas) ------
        # lane-dense output: (n_cls, B*nP)
        mproj = pallas_affine_t(self.w_all_t, xt, self.b_all)
        mproj = mproj.reshape(self.n_cls, B, nD, nH, nW)
        mproj = mproj.transpose(1, 0, 2, 3, 4)             # (B,n_cls,nD,nH,nW)

        # -- trilinear upsample: D and H on the tiny low-res tensor (XLA), ----
        #    W interpolation fused into the output-head kernel below.
        Pd = _interp_matrix(D, nD)
        Ph = _interp_matrix(H, nH)
        Pw = _interp_matrix(W, nW)
        t = jnp.einsum('dk,bnkhw->bndhw', Pd, mproj)        # (B,n_cls,D,nH,nW)
        t = jnp.einsum('hk,bndkw->bndhw', Ph, t)            # (B,n_cls,D,H,nW)

        # -- fused W-upsample + concat([masks, im]) @ W_out + b_out (Pallas) --
        out = pallas_fused_head(t, jnp.transpose(Pw), im,
                                self.w_im, self.b_out, tile_d=8)

        out = unpadding(out, (D_ori, H_ori, W_ori))
        return out


# ----------------------------------------------------------------------------
if __name__ == "__main__":
    key = jax.random.PRNGKey(0)
    kp, kx = jax.random.split(key)

    model = SegmenterPallas(kp, in_chans=4, n_cls=5, patch_size=4,
                            d_model=32, decoder_n_layers=1)

    # small NCDHW input (batch=2, channels=4, spatial=6^3 -> padded to 8^3)
    im = jax.random.normal(kx, (2, 4, 6, 6, 6), dtype=jnp.float32)

    fwd = jax.jit(lambda x: model(x))
    out = fwd(im)
    out = jax.block_until_ready(out)
    assert out.shape == (2, 5, 6, 6, 6), out.shape
    assert jnp.all(jnp.isfinite(out))
    print("KERNEL_OK")
</pallas_src>

<mosaic_0001>
module attributes {stable_mosaic.version = 11 : i64} {
  func.func @_affine_t_kernel(%arg0: i32, %arg1: memref<5x256xf32, #tpu.memory_space<vmem>>, %arg2: memref<256x128xf32, #tpu.memory_space<vmem>>, %arg3: memref<5x1xf32, #tpu.memory_space<vmem>>, %arg4: memref<5x128xf32, #tpu.memory_space<vmem>>) attributes {dimension_semantics = [#tpu.dimension_semantics<parallel>], iteration_bounds = array<i64: 1>, scalar_prefetch = 0 : i64, scratch_operands = 0 : i64, tpu.core_type = #tpu.core_type<tc>, window_params = [{pipeline_mode = #tpu.pipeline_mode<synchronous>, transform_indices = @transform_0, window_bounds = array<i64: 5, 256>}, {transform_indices = @transform_1, window_bounds = array<i64: 256, 128>}, {pipeline_mode = #tpu.pipeline_mode<synchronous>, transform_indices = @transform_2, window_bounds = array<i64: 5, 1>}, {transform_indices = @transform_3, window_bounds = array<i64: 5, 128>}]} {
    %c0 = arith.constant 0 : index
    %c0_0 = arith.constant 0 : index
    %0 = vector.load %arg1[%c0, %c0_0] : memref<5x256xf32, #tpu.memory_space<vmem>>, vector<5x256xf32>
    %c0_1 = arith.constant 0 : index
    %c0_2 = arith.constant 0 : index
    %1 = vector.load %arg2[%c0_1, %c0_2] : memref<256x128xf32, #tpu.memory_space<vmem>>, vector<256x128xf32>
    %cst = arith.constant dense<0.000000e+00> : vector<5x128xf32>
    %2 = tpu.matmul %0, %1, %cst {dimension_numbers = #tpu.dot_dimension_numbers<[1], [0], [0], [1], [0, 0, 1, 1], [], []>} : vector<5x256xf32>, vector<256x128xf32>, vector<5x128xf32> -> vector<5x128xf32>
    %c0_3 = arith.constant 0 : index
    %c0_4 = arith.constant 0 : index
    %3 = vector.load %arg3[%c0_3, %c0_4] : memref<5x1xf32, #tpu.memory_space<vmem>>, vector<5x1xf32>
    %4 = vector.broadcast %3 : vector<5x1xf32> to vector<5x128xf32>
    %5 = arith.addf %2, %4 : vector<5x128xf32>
    %c0_5 = arith.constant 0 : index
    %c0_6 = arith.constant 0 : index
    %6 = vector.load %arg4[%c0_5, %c0_6] : memref<5x128xf32, #tpu.memory_space<vmem>>, vector<5x128xf32>
    tpu.vector_store %arg4[%c0_5, %c0_6], %5 {strides = array<i32>} : memref<5x128xf32, #tpu.memory_space<vmem>>, vector<5x128xf32>,
    return
  }
  func.func @transform_0(%arg0: i32) -> (i32, i32) {
    %c0_i32 = arith.constant 0 : i32
    %c0_i32_0 = arith.constant 0 : i32
    %c0_i32_1 = arith.constant 0 : i32
    return %c0_i32, %c0_i32_0 : i32, i32
  }
  func.func @transform_1(%arg0: i32) -> (i32, i32) {
    %c0_i32 = arith.constant 0 : i32
    %c0_i32_0 = arith.constant 0 : i32
    return %c0_i32, %arg0 : i32, i32
  }
  func.func @transform_2(%arg0: i32) -> (i32, i32) {
    %c0_i32 = arith.constant 0 : i32
    %c0_i32_0 = arith.constant 0 : i32
    %c0_i32_1 = arith.constant 0 : i32
    return %c0_i32, %c0_i32_0 : i32, i32
  }
  func.func @transform_3(%arg0: i32) -> (i32, i32) {
    %c0_i32 = arith.constant 0 : i32
    %c0_i32_0 = arith.constant 0 : i32
    return %c0_i32, %arg0 : i32, i32
  }
}

module attributes {stable_mosaic.version = 11 : i64} {
  func.func @_head_kernel(%arg0: i32, %arg1: i32, %arg2: memref<5x8x8x2xf32, #tpu.memory_space<vmem>>, %arg3: memref<2x8xf32, #tpu.memory_space<vmem>>, %arg4: memref<4x8x8x8xf32, #tpu.memory_space<vmem>>, %arg5: memref<4x5xf32, #tpu.memory_space<smem>>, %arg6: memref<1x5xf32, #tpu.memory_space<smem>>, %arg7: memref<5x8x8x8xf32, #tpu.memory_space<vmem>>) attributes {dimension_semantics = [#tpu.dimension_semantics<parallel>, #tpu.dimension_semantics<parallel>], iteration_bounds = array<i64: 2, 1>, scalar_prefetch = 0 : i64, scratch_operands = 0 : i64, tpu.core_type = #tpu.core_type<tc>, window_params = [{transform_indices = @transform_0, window_bounds = array<i64: 5, 8, 8, 2>}, {pipeline_mode = #tpu.pipeline_mode<synchronous>, transform_indices = @transform_1, window_bounds = array<i64: 2, 8>}, {transform_indices = @transform_2, window_bounds = array<i64: 4, 8, 8, 8>}, {transform_indices = @transform_3, window_bounds = array<i64: 4, 5>}, {transform_indices = @transform_4, window_bounds = array<i64: 1, 5>}, {transform_indices = @transform_5, window_bounds = array<i64: 5, 8, 8, 8>}]} {
    %c0 = arith.constant 0 : index
    %c0_0 = arith.constant 0 : index
    %0 = vector.load %arg3[%c0, %c0_0] : memref<2x8xf32, #tpu.memory_space<vmem>>, vector<2x8xf32>
    %c0_1 = arith.constant 0 : index
    %c0_2 = arith.constant 0 : index
    %c0_3 = arith.constant 0 : index
    %c0_4 = arith.constant 0 : index
    %1 = vector.load %arg2[%c0_1, %c0_2, %c0_3, %c0_4] : memref<5x8x8x2xf32, #tpu.memory_space<vmem>>, vector<1x8x8x2xf32>
    %2 = vector.shape_cast %1 : vector<1x8x8x2xf32> to vector<8x8x2xf32>
    %3 = vector.shape_cast %2 : vector<8x8x2xf32> to vector<64x2xf32>
    %cst = arith.constant dense<0.000000e+00> : vector<64x8xf32>
    %4 = tpu.matmul %3, %0, %cst {dimension_numbers = #tpu.dot_dimension_numbers<[1], [0], [0], [1], [0, 0, 1, 1], [], []>} : vector<64x2xf32>, vector<2x8xf32>, vector<64x8xf32> -> vector<64x8xf32>
    %5 = vector.shape_cast %4 : vector<64x8xf32> to vector<8x8x8xf32>
    %c0_5 = arith.constant 0 : index
    %c0_6 = arith.constant 0 : index
    %6 = memref.load %arg6[%c0_5, %c0_6] : memref<1x5xf32, #tpu.memory_space<smem>>
    %7 = vector.broadcast %6 : f32 to vector<8x8x8xf32>
    %8 = arith.addf %5, %7 : vector<8x8x8xf32>
    %c0_7 = arith.constant 0 : index
    %c0_8 = arith.constant 0 : index
    %9 = memref.load %arg5[%c0_7, %c0_8] : memref<4x5xf32, #tpu.memory_space<smem>>
    %c0_9 = arith.constant 0 : index
    %c0_10 = arith.constant 0 : index
    %c0_11 = arith.constant 0 : index
    %c0_12 = arith.constant 0 : index
    %10 = vector.load %arg4[%c0_9, %c0_10, %c0_11, %c0_12] : memref<4x8x8x8xf32, #tpu.memory_space<vmem>>, vector<1x8x8x8xf32>
    %11 = vector.shape_cast %10 : vector<1x8x8x8xf32> to vector<8x8x8xf32>
    %12 = vector.broadcast %9 : f32 to vector<8x8x8xf32>
    %13 = arith.mulf %12, %11 : vector<8x8x8xf32>
    %14 = arith.addf %8, %13 : vector<8x8x8xf32>
    %c1 = arith.constant 1 : index
    %c0_13 = arith.constant 0 : index
    %15 = memref.load %arg5[%c1, %c0_13] : memref<4x5xf32, #tpu.memory_space<smem>>
    %c1_14 = arith.constant 1 : index
    %c0_15 = arith.constant 0 : index
    %c0_16 = arith.constant 0 : index
    %c0_17 = arith.constant 0 : index
    %16 = vector.load %arg4[%c1_14, %c0_15, %c0_16, %c0_17] : memref<4x8x8x8xf32, #tpu.memory_space<vmem>>, vector<1x8x8x8xf32>
    %17 = vector.shape_cast %16 : vector<1x8x8x8xf32> to vector<8x8x8xf32>
    %18 = vector.broadcast %15 : f32 to vector<8x8x8xf32>
    %19 = arith.mulf %18, %17 : vector<8x8x8xf32>
    %20 = arith.addf %14, %19 : vector<8x8x8xf32>
    %c2 = arith.constant 2 : index
    %c0_18 = arith.constant 0 : index
    %21 = memref.load %arg5[%c2, %c0_18] : memref<4x5xf32, #tpu.memory_space<smem>>
    %c2_19 = arith.constant 2 : index
    %c0_20 = arith.constant 0 : index
    %c0_21 = arith.constant 0 : index
    %c0_22 = arith.constant 0 : index
    %22 = vector.load %arg4[%c2_19, %c0_20, %c0_21, %c0_22] : memref<4x8x8x8xf32, #tpu.memory_space<vmem>>, vector<1x8x8x8xf32>
    %23 = vector.shape_cast %22 : vector<1x8x8x8xf32> to vector<8x8x8xf32>
    %24 = vector.broadcast %21 : f32 to vector<8x8x8xf32>
    %25 = arith.mulf %24, %23 : vector<8x8x8xf32>
    %26 = arith.addf %20, %25 : vector<8x8x8xf32>
    %c3 = arith.constant 3 : index
    %c0_23 = arith.constant 0 : index
    %27 = memref.load %arg5[%c3, %c0_23] : memref<4x5xf32, #tpu.memory_space<smem>>
    %c3_24 = arith.constant 3 : index
    %c0_25 = arith.constant 0 : index
    %c0_26 = arith.constant 0 : index
    %c0_27 = arith.constant 0 : index
    %28 = vector.load %arg4[%c3_24, %c0_25, %c0_26, %c0_27] : memref<4x8x8x8xf32, #tpu.memory_space<vmem>>, vector<1x8x8x8xf32>
    %29 = vector.shape_cast %28 : vector<1x8x8x8xf32> to vector<8x8x8xf32>
    %30 = vector.broadcast %27 : f32 to vector<8x8x8xf32>
    %31 = arith.mulf %30, %29 : vector<8x8x8xf32>
    %32 = arith.addf %26, %31 : vector<8x8x8xf32>
    %c0_28 = arith.constant 0 : index
    %c0_29 = arith.constant 0 : index
    %c0_30 = arith.constant 0 : index
    %c0_31 = arith.constant 0 : index
    %33 = vector.load %arg7[%c0_28, %c0_29, %c0_30, %c0_31] : memref<5x8x8x8xf32, #tpu.memory_space<vmem>>, vector<1x8x8x8xf32>
    %34 = vector.shape_cast %33 : vector<1x8x8x8xf32> to vector<8x8x8xf32>
    %35 = vector.shape_cast %32 : vector<8x8x8xf32> to vector<1x8x8x8xf32>
    tpu.vector_store %arg7[%c0_28, %c0_29, %c0_30, %c0_31], %35 {strides = array<i32>} : memref<5x8x8x8xf32, #tpu.memory_space<vmem>>, vector<1x8x8x8xf32>,
    %c1_32 = arith.constant 1 : index
    %c0_33 = arith.constant 0 : index
    %c0_34 = arith.constant 0 : index
    %c0_35 = arith.constant 0 : index
    %36 = vector.load %arg2[%c1_32, %c0_33, %c0_34, %c0_35] : memref<5x8x8x2xf32, #tpu.memory_space<vmem>>, vector<1x8x8x2xf32>
    %37 = vector.shape_cast %36 : vector<1x8x8x2xf32> to vector<8x8x2xf32>
    %38 = vector.shape_cast %37 : vector<8x8x2xf32> to vector<64x2xf32>
    %cst_36 = arith.constant dense<0.000000e+00> : vector<64x8xf32>
    %39 = tpu.matmul %38, %0, %cst_36 {dimension_numbers = #tpu.dot_dimension_numbers<[1], [0], [0], [1], [0, 0, 1, 1], [], []>} : vector<64x2xf32>, vector<2x8xf32>, vector<64x8xf32> -> vector<64x8xf32>
    %40 = vector.shape_cast %39 : vector<64x8xf32> to vector<8x8x8xf32>
    %c0_37 = arith.constant 0 : index
    %c1_38 = arith.constant 1 : index
    %41 = memref.load %arg6[%c0_37, %c1_38] : memref<1x5xf32, #tpu.memory_space<smem>>
    %42 = vector.broadcast %41 : f32 to vector<8x8x8xf32>
    %43 = arith.addf %40, %42 : vector<8x8x8xf32>
    %c0_39 = arith.constant 0 : index
    %c1_40 = arith.constant 1 : index
    %44 = memref.load %arg5[%c0_39, %c1_40] : memref<4x5xf32, #tpu.memory_space<smem>>
    %c0_41 = arith.constant 0 : index
    %c0_42 = arith.constant 0 : index
    %c0_43 = arith.constant 0 : index
    %c0_44 = arith.constant 0 : index
    %45 = vector.load %arg4[%c0_41, %c0_42, %c0_43, %c0_44] : memref<4x8x8x8xf32, #tpu.memory_space<vmem>>, vector<1x8x8x8xf32>
    %46 = vector.shape_cast %45 : vector<1x8x8x8xf32> to vector<8x8x8xf32>
    %47 = vector.broadcast %44 : f32 to vector<8x8x8xf32>
    %48 = arith.mulf %47, %46 : vector<8x8x8xf32>
    %49 = arith.addf %43, %48 : vector<8x8x8xf32>
    %c1_45 = arith.constant 1 : index
    %c1_46 = arith.constant 1 : index
    %50 = memref.load %arg5[%c1_45, %c1_46] : memref<4x5xf32, #tpu.memory_space<smem>>
    %c1_47 = arith.constant 1 : index
    %c0_48 = arith.constant 0 : index
    %c0_49 = arith.constant 0 : index
    %c0_50 = arith.constant 0 : index
    %51 = vector.load %arg4[%c1_47, %c0_48, %c0_49, %c0_50] : memref<4x8x8x8xf32, #tpu.memory_space<vmem>>, vector<1x8x8x8xf32>
    %52 = vector.shape_cast %51 : vector<1x8x8x8xf32> to vector<8x8x8xf32>
    %53 = vector.broadcast %50 : f32 to vector<8x8x8xf32>
    %54 = arith.mulf %53, %52 : vector<8x8x8xf32>
    %55 = arith.addf %49, %54 : vector<8x8x8xf32>
    %c2_51 = arith.constant 2 : index
    %c1_52 = arith.constant 1 : index
    %56 = memref.load %arg5[%c2_51, %c1_52] : memref<4x5xf32, #tpu.memory_space<smem>>
    %c2_53 = arith.constant 2 : index
    %c0_54 = arith.constant 0 : index
    %c0_55 = arith.constant 0 : index
    %c0_56 = arith.constant 0 : index
    %57 = vector.load %arg4[%c2_53, %c0_54, %c0_55, %c0_56] : memref<4x8x8x8xf32, #tpu.memory_space<vmem>>, vector<1x8x8x8xf32>
    %58 = vector.shape_cast %57 : vector<1x8x8x8xf32> to vector<8x8x8xf32>
    %59 = vector.broadcast %56 : f32 to vector<8x8x8xf32>
    %60 = arith.mulf %59, %58 : vector<8x8x8xf32>
    %61 = arith.addf %55, %60 : vector<8x8x8xf32>
    %c3_57 = arith.constant 3 : index
    %c1_58 = arith.constant 1 : index
    %62 = memref.load %arg5[%c3_57, %c1_58] : memref<4x5xf32, #tpu.memory_space<smem>>
    %c3_59 = arith.constant 3 : index
    %c0_60 = arith.constant 0 : index
    %c0_61 = arith.constant 0 : index
    %c0_62 = arith.constant 0 : index
    %63 = vector.load %arg4[%c3_59, %c0_60, %c0_61, %c0_62] : memref<4x8x8x8xf32, #tpu.memory_space<vmem>>, vector<1x8x8x8xf32>
    %64 = vector.shape_cast %63 : vector<1x8x8x8xf32> to vector<8x8x8xf32>
    %65 = vector.broadcast %62 : f32 to vector<8x8x8xf32>
    %66 = arith.mulf %65, %64 : vector<8x8x8xf32>
    %67 = arith.addf %61, %66 : vector<8x8x8xf32>
    %c1_63 = arith.constant 1 : index
    %c0_64 = arith.constant 0 : index
    %c0_65 = arith.constant 0 : index
    %c0_66 = arith.constant 0 : index
    %68 = vector.load %arg7[%c1_63, %c0_64, %c0_65, %c0_66] : memref<5x8x8x8xf32, #tpu.memory_space<vmem>>, vector<1x8x8x8xf32>
    %69 = vector.shape_cast %68 : vector<1x8x8x8xf32> to vector<8x8x8xf32>
    %70 = vector.shape_cast %67 : vector<8x8x8xf32> to vector<1x8x8x8xf32>
    tpu.vector_store %arg7[%c1_63, %c0_64, %c0_65, %c0_66], %70 {strides = array<i32>} : memref<5x8x8x8xf32, #tpu.memory_space<vmem>>, vector<1x8x8x8xf32>,
    %c2_67 = arith.constant 2 : index
    %c0_68 = arith.constant 0 : index
    %c0_69 = arith.constant 0 : index
    %c0_70 = arith.constant 0 : index
    %71 = vector.load %arg2[%c2_67, %c0_68, %c0_69, %c0_70] : memref<5x8x8x2xf32, #tpu.memory_space<vmem>>, vector<1x8x8x2xf32>
    %72 = vector.shape_cast %71 : vector<1x8x8x2xf32> to vector<8x8x2xf32>
    %73 = vector.shape_cast %72 : vector<8x8x2xf32> to vector<64x2xf32>
    %cst_71 = arith.constant dense<0.000000e+00> : vector<64x8xf32>
    %74 = tpu.matmul %73, %0, %cst_71 {dimension_numbers = #tpu.dot_dimension_numbers<[1], [0], [0], [1], [0, 0, 1, 1], [], []>} : vector<64x2xf32>, vector<2x8xf32>, vector<64x8xf32> -> vector<64x8xf32>
    %75 = vector.shape_cast %74 : vector<64x8xf32> to vector<8x8x8xf32>
    %c0_72 = arith.constant 0 : index
    %c2_73 = arith.constant 2 : index
    %76 = memref.load %arg6[%c0_72, %c2_73] : memref<1x5xf32, #tpu.memory_space<smem>>
    %77 = vector.broadcast %76 : f32 to vector<8x8x8xf32>
    %78 = arith.addf %75, %77 : vector<8x8x8xf32>
    %c0_74 = arith.constant 0 : index
    %c2_75 = arith.constant 2 : index
    %79 = memref.load %arg5[%c0_74, %c2_75] : memref<4x5xf32, #tpu.memory_space<smem>>
    %c0_76 = arith.constant 0 : index
    %c0_77 = arith.constant 0 : index
    %c0_78 = arith.constant 0 : index
    %c0_79 = arith.constant 0 : index
    %80 = vector.load %arg4[%c0_76, %c0_77, %c0_78, %c0_79] : memref<4x8x8x8xf32, #tpu.memory_space<vmem>>, vector<1x8x8x8xf32>
    %81 = vector.shape_cast %80 : vector<1x8x8x8xf32> to vector<8x8x8xf32>
    %82 = vector.broadcast %79 : f32 to vector<8x8x8xf32>
    %83 = arith.mulf %82, %81 : vector<8x8x8xf32>
    %84 = arith.addf %78, %83 : vector<8x8x8xf32>
    %c1_80 = arith.constant 1 : index
    %c2_81 = arith.constant 2 : index
    %85 = memref.load %arg5[%c1_80, %c2_81] : memref<4x5xf32, #tpu.memory_space<smem>>
    %c1_82 = arith.constant 1 : index
    %c0_83 = arith.constant 0 : index
    %c0_84 = arith.constant 0 : index
    %c0_85 = arith.constant 0 : index
    %86 = vector.load %arg4[%c1_82, %c0_83, %c0_84, %c0_85] : memref<4x8x8x8xf32, #tpu.memory_space<vmem>>, vector<1x8x8x8xf32>
    %87 = vector.shape_cast %86 : vector<1x8x8x8xf32> to vector<8x8x8xf32>
    %88 = vector.broadcast %85 : f32 to vector<8x8x8xf32>
    %89 = arith.mulf %88, %87 : vector<8x8x8xf32>
    %90 = arith.addf %84, %89 : vector<8x8x8xf32>
    %c2_86 = arith.constant 2 : index
    %c2_87 = arith.constant 2 : index
    %91 = memref.load %arg5[%c2_86, %c2_87] : memref<4x5xf32, #tpu.memory_space<smem>>
    %c2_88 = arith.constant 2 : index
    %c0_89 = arith.constant 0 : index
    %c0_90 = arith.constant 0 : index
    %c0_91 = arith.constant 0 : index
    %92 = vector.load %arg4[%c2_88, %c0_89, %c0_90, %c0_91] : memref<4x8x8x8xf32, #tpu.memory_space<vmem>>, vector<1x8x8x8xf32>
    %93 = vector.shape_cast %92 : vector<1x8x8x8xf32> to vector<8x8x8xf32>
    %94 = vector.broadcast %91 : f32 to vector<8x8x8xf32>
    %95 = arith.mulf %94, %93 : vector<8x8x8xf32>
    %96 = arith.addf %90, %95 : vector<8x8x8xf32>
    %c3_92 = arith.constant 3 : index
    %c2_93 = arith.constant 2 : index
    %97 = memref.load %arg5[%c3_92, %c2_93] : memref<4x5xf32, #tpu.memory_space<smem>>
    %c3_94 = arith.constant 3 : index
    %c0_95 = arith.constant 0 : index
    %c0_96 = arith.constant 0 : index
    %c0_97 = arith.constant 0 : index
    %98 = vector.load %arg4[%c3_94, %c0_95, %c0_96, %c0_97] : memref<4x8x8x8xf32, #tpu.memory_space<vmem>>, vector<1x8x8x8xf32>
    %99 = vector.shape_cast %98 : vector<1x8x8x8xf32> to vector<8x8x8xf32>
    %100 = vector.broadcast %97 : f32 to vector<8x8x8xf32>
    %101 = arith.mulf %100, %99 : vector<8x8x8xf32>
    %102 = arith.addf %96, %101 : vector<8x8x8xf32>
    %c2_98 = arith.constant 2 : index
    %c0_99 = arith.constant 0 : index
    %c0_100 = arith.constant 0 : index
    %c0_101 = arith.constant 0 : index
    %103 = vector.load %arg7[%c2_98, %c0_99, %c0_100, %c0_101] : memref<5x8x8x8xf32, #tpu.memory_space<vmem>>, vector<1x8x8x8xf32>
    %104 = vector.shape_cast %103 : vector<1x8x8x8xf32> to vector<8x8x8xf32>
    %105 = vector.shape_cast %102 : vector<8x8x8xf32> to vector<1x8x8x8xf32>
    tpu.vector_store %arg7[%c2_98, %c0_99, %c0_100, %c0_101], %105 {strides = array<i32>} : memref<5x8x8x8xf32, #tpu.memory_space<vmem>>, vector<1x8x8x8xf32>,
    %c3_102 = arith.constant 3 : index
    %c0_103 = arith.constant 0 : index
    %c0_104 = arith.constant 0 : index
    %c0_105 = arith.constant 0 : index
    %106 = vector.load %arg2[%c3_102, %c0_103, %c0_104, %c0_105] : memref<5x8x8x2xf32, #tpu.memory_space<vmem>>, vector<1x8x8x2xf32>
    %107 = vector.shape_cast %106 : vector<1x8x8x2xf32> to vector<8x8x2xf32>
    %108 = vector.shape_cast %107 : vector<8x8x2xf32> to vector<64x2xf32>
    %cst_106 = arith.constant dense<0.000000e+00> : vector<64x8xf32>
    %109 = tpu.matmul %108, %0, %cst_106 {dimension_numbers = #tpu.dot_dimension_numbers<[1], [0], [0], [1], [0, 0, 1, 1], [], []>} : vector<64x2xf32>, vector<2x8xf32>, vector<64x8xf32> -> vector<64x8xf32>
    %110 = vector.shape_cast %109 : vector<64x8xf32> to vector<8x8x8xf32>
    %c0_107 = arith.constant 0 : index
    %c3_108 = arith.constant 3 : index
    %111 = memref.load %arg6[%c0_107, %c3_108] : memref<1x5xf32, #tpu.memory_space<smem>>
    %112 = vector.broadcast %111 : f32 to vector<8x8x8xf32>
    %113 = arith.addf %110, %112 : vector<8x8x8xf32>
    %c0_109 = arith.constant 0 : index
    %c3_110 = arith.constant 3 : index
    %114 = memref.load %arg5[%c0_109, %c3_110] : memref<4x5xf32, #tpu.memory_space<smem>>
    %c0_111 = arith.constant 0 : index
    %c0_112 = arith.constant 0 : index
    %c0_113 = arith.constant 0 : index
    %c0_114 = arith.constant 0 : index
    %115 = vector.load %arg4[%c0_111, %c0_112, %c0_113, %c0_114] : memref<4x8x8x8xf32, #tpu.memory_space<vmem>>, vector<1x8x8x8xf32>
    %116 = vector.shape_cast %115 : vector<1x8x8x8xf32> to vector<8x8x8xf32>
    %117 = vector.broadcast %114 : f32 to vector<8x8x8xf32>
    %118 = arith.mulf %117, %116 : vector<8x8x8xf32>
    %119 = arith.addf %113, %118 : vector<8x8x8xf32>
    %c1_115 = arith.constant 1 : index
    %c3_116 = arith.constant 3 : index
    %120 = memref.load %arg5[%c1_115, %c3_116] : memref<4x5xf32, #tpu.memory_space<smem>>
    %c1_117 = arith.constant 1 : index
    %c0_118 = arith.constant 0 : index
    %c0_119 = arith.constant 0 : index
    %c0_120 = arith.constant 0 : index
    %121 = vector.load %arg4[%c1_117, %c0_118, %c0_119, %c0_120] : memref<4x8x8x8xf32, #tpu.memory_space<vmem>>, vector<1x8x8x8xf32>
    %122 = vector.shape_cast %121 : vector<1x8x8x8xf32> to vector<8x8x8xf32>
    %123 = vector.broadcast %120 : f32 to vector<8x8x8xf32>
    %124 = arith.mulf %123, %122 : vector<8x8x8xf32>
    %125 = arith.addf %119, %124 : vector<8x8x8xf32>
    %c2_121 = arith.constant 2 : index
    %c3_122 = arith.constant 3 : index
    %126 = memref.load %arg5[%c2_121, %c3_122] : memref<4x5xf32, #tpu.memory_space<smem>>
    %c2_123 = arith.constant 2 : index
    %c0_124 = arith.constant 0 : index
    %c0_125 = arith.constant 0 : index
    %c0_126 = arith.constant 0 : index
    %127 = vector.load %arg4[%c2_123, %c0_124, %c0_125, %c0_126] : memref<4x8x8x8xf32, #tpu.memory_space<vmem>>, vector<1x8x8x8xf32>
    %128 = vector.shape_cast %127 : vector<1x8x8x8xf32> to vector<8x8x8xf32>
    %129 = vector.broadcast %126 : f32 to vector<8x8x8xf32>
    %130 = arith.mulf %129, %128 : vector<8x8x8xf32>
    %131 = arith.addf %125, %130 : vector<8x8x8xf32>
    %c3_127 = arith.constant 3 : index
    %c3_128 = arith.constant 3 : index
    %132 = memref.load %arg5[%c3_127, %c3_128] : memref<4x5xf32, #tpu.memory_space<smem>>
    %c3_129 = arith.constant 3 : index
    %c0_130 = arith.constant 0 : index
    %c0_131 = arith.constant 0 : index
    %c0_132 = arith.constant 0 : index
    %133 = vector.load %arg4[%c3_129, %c0_130, %c0_131, %c0_132] : memref<4x8x8x8xf32, #tpu.memory_space<vmem>>, vector<1x8x8x8xf32>
    %134 = vector.shape_cast %133 : vector<1x8x8x8xf32> to vector<8x8x8xf32>
    %135 = vector.broadcast %132 : f32 to vector<8x8x8xf32>
    %136 = arith.mulf %135, %134 : vector<8x8x8xf32>
    %137 = arith.addf %131, %136 : vector<8x8x8xf32>
    %c3_133 = arith.constant 3 : index
    %c0_134 = arith.constant 0 : index
    %c0_135 = arith.constant 0 : index
    %c0_136 = arith.constant 0 : index
    %138 = vector.load %arg7[%c3_133, %c0_134, %c0_135, %c0_136] : memref<5x8x8x8xf32, #tpu.memory_space<vmem>>, vector<1x8x8x8xf32>
    %139 = vector.shape_cast %138 : vector<1x8x8x8xf32> to vector<8x8x8xf32>
    %140 = vector.shape_cast %137 : vector<8x8x8xf32> to vector<1x8x8x8xf32>
    tpu.vector_store %arg7[%c3_133, %c0_134, %c0_135, %c0_136], %140 {strides = array<i32>} : memref<5x8x8x8xf32, #tpu.memory_space<vmem>>, vector<1x8x8x8xf32>,
    %c4 = arith.constant 4 : index
    %c0_137 = arith.constant 0 : index
    %c0_138 = arith.constant 0 : index
    %c0_139 = arith.constant 0 : index
    %141 = vector.load %arg2[%c4, %c0_137, %c0_138, %c0_139] : memref<5x8x8x2xf32, #tpu.memory_space<vmem>>, vector<1x8x8x2xf32>
    %142 = vector.shape_cast %141 : vector<1x8x8x2xf32> to vector<8x8x2xf32>
    %143 = vector.shape_cast %142 : vector<8x8x2xf32> to vector<64x2xf32>
    %cst_140 = arith.constant dense<0.000000e+00> : vector<64x8xf32>
    %144 = tpu.matmul %143, %0, %cst_140 {dimension_numbers = #tpu.dot_dimension_numbers<[1], [0], [0], [1], [0, 0, 1, 1], [], []>} : vector<64x2xf32>, vector<2x8xf32>, vector<64x8xf32> -> vector<64x8xf32>
    %145 = vector.shape_cast %144 : vector<64x8xf32> to vector<8x8x8xf32>
    %c0_141 = arith.constant 0 : index
    %c4_142 = arith.constant 4 : index
    %146 = memref.load %arg6[%c0_141, %c4_142] : memref<1x5xf32, #tpu.memory_space<smem>>
    %147 = vector.broadcast %146 : f32 to vector<8x8x8xf32>
    %148 = arith.addf %145, %147 : vector<8x8x8xf32>
    %c0_143 = arith.constant 0 : index
    %c4_144 = arith.constant 4 : index
    %149 = memref.load %arg5[%c0_143, %c4_144] : memref<4x5xf32, #tpu.memory_space<smem>>
    %c0_145 = arith.constant 0 : index
    %c0_146 = arith.constant 0 : index
    %c0_147 = arith.constant 0 : index
    %c0_148 = arith.constant 0 : index
    %150 = vector.load %arg4[%c0_145, %c0_146, %c0_147, %c0_148] : memref<4x8x8x8xf32, #tpu.memory_space<vmem>>, vector<1x8x8x8xf32>
    %151 = vector.shape_cast %150 : vector<1x8x8x8xf32> to vector<8x8x8xf32>
    %152 = vector.broadcast %149 : f32 to vector<8x8x8xf32>
    %153 = arith.mulf %152, %151 : vector<8x8x8xf32>
    %154 = arith.addf %148, %153 : vector<8x8x8xf32>
    %c1_149 = arith.constant 1 : index
    %c4_150 = arith.constant 4 : index
    %155 = memref.load %arg5[%c1_149, %c4_150] : memref<4x5xf32, #tpu.memory_space<smem>>
    %c1_151 = arith.constant 1 : index
    %c0_152 = arith.constant 0 : index
    %c0_153 = arith.constant 0 : index
    %c0_154 = arith.constant 0 : index
    %156 = vector.load %arg4[%c1_151, %c0_152, %c0_153, %c0_154] : memref<4x8x8x8xf32, #tpu.memory_space<vmem>>, vector<1x8x8x8xf32>
    %157 = vector.shape_cast %156 : vector<1x8x8x8xf32> to vector<8x8x8xf32>
    %158 = vector.broadcast %155 : f32 to vector<8x8x8xf32>
    %159 = arith.mulf %158, %157 : vector<8x8x8xf32>
    %160 = arith.addf %154, %159 : vector<8x8x8xf32>
    %c2_155 = arith.constant 2 : index
    %c4_156 = arith.constant 4 : index
    %161 = memref.load %arg5[%c2_155, %c4_156] : memref<4x5xf32, #tpu.memory_space<smem>>
    %c2_157 = arith.constant 2 : index
    %c0_158 = arith.constant 0 : index
    %c0_159 = arith.constant 0 : index
    %c0_160 = arith.constant 0 : index
    %162 = vector.load %arg4[%c2_157, %c0_158, %c0_159, %c0_160] : memref<4x8x8x8xf32, #tpu.memory_space<vmem>>, vector<1x8x8x8xf32>
    %163 = vector.shape_cast %162 : vector<1x8x8x8xf32> to vector<8x8x8xf32>
    %164 = vector.broadcast %161 : f32 to vector<8x8x8xf32>
    %165 = arith.mulf %164, %163 : vector<8x8x8xf32>
    %166 = arith.addf %160, %165 : vector<8x8x8xf32>
    %c3_161 = arith.constant 3 : index
    %c4_162 = arith.constant 4 : index
    %167 = memref.load %arg5[%c3_161, %c4_162] : memref<4x5xf32, #tpu.memory_space<smem>>
    %c3_163 = arith.constant 3 : index
    %c0_164 = arith.constant 0 : index
    %c0_165 = arith.constant 0 : index
    %c0_166 = arith.constant 0 : index
    %168 = vector.load %arg4[%c3_163, %c0_164, %c0_165, %c0_166] : memref<4x8x8x8xf32, #tpu.memory_space<vmem>>, vector<1x8x8x8xf32>
    %169 = vector.shape_cast %168 : vector<1x8x8x8xf32> to vector<8x8x8xf32>
    %170 = vector.broadcast %167 : f32 to vector<8x8x8xf32>
    %171 = arith.mulf %170, %169 : vector<8x8x8xf32>
    %172 = arith.addf %166, %171 : vector<8x8x8xf32>
    %c4_167 = arith.constant 4 : index
    %c0_168 = arith.constant 0 : index
    %c0_169 = arith.constant 0 : index
    %c0_170 = arith.constant 0 : index
    %173 = vector.load %arg7[%c4_167, %c0_168, %c0_169, %c0_170] : memref<5x8x8x8xf32, #tpu.memory_space<vmem>>, vector<1x8x8x8xf32>
    %174 = vector.shape_cast %173 : vector<1x8x8x8xf32> to vector<8x8x8xf32>
    %175 = vector.shape_cast %172 : vector<8x8x8xf32> to vector<1x8x8x8xf32>
    tpu.vector_store %arg7[%c4_167, %c0_168, %c0_169, %c0_170], %175 {strides = array<i32>} : memref<5x8x8x8xf32, #tpu.memory_space<vmem>>, vector<1x8x8x8xf32>,
    return
  }
  func.func @transform_0(%arg0: i32, %arg1: i32) -> (i32, i32, i32, i32) {
    %c0_i32 = arith.constant 0 : i32
    %c0_i32_0 = arith.constant 0 : i32
    %c0_i32_1 = arith.constant 0 : i32
    return %arg0, %arg1, %c0_i32, %c0_i32_0 : i32, i32, i32, i32
  }
  func.func @transform_1(%arg0: i32, %arg1: i32) -> (i32, i32) {
    %c0_i32 = arith.constant 0 : i32
    %c0_i32_0 = arith.constant 0 : i32
    %c0_i32_1 = arith.constant 0 : i32
    return %c0_i32, %c0_i32_0 : i32, i32
  }
  func.func @transform_2(%arg0: i32, %arg1: i32) -> (i32, i32, i32, i32) {
    %c0_i32 = arith.constant 0 : i32
    %c0_i32_0 = arith.constant 0 : i32
    %c0_i32_1 = arith.constant 0 : i32
    return %arg0, %arg1, %c0_i32, %c0_i32_0 : i32, i32, i32, i32
  }
  func.func @transform_3(%arg0: i32, %arg1: i32) -> (i32, i32) {
    %c0_i32 = arith.constant 0 : i32
    %c0_i32_0 = arith.constant 0 : i32
    %c0_i32_1 = arith.constant 0 : i32
    return %c0_i32, %c0_i32_0 : i32, i32
  }
  func.func @transform_4(%arg0: i32, %arg1: i32) -> (i32, i32) {
    %c0_i32 = arith.constant 0 : i32
    %c0_i32_0 = arith.constant 0 : i32
    %c0_i32_1 = arith.constant 0 : i32
    return %c0_i32, %c0_i32_0 : i32, i32
  }
  func.func @transform_5(%arg0: i32, %arg1: i32) -> (i32, i32, i32, i32) {
    %c0_i32 = arith.constant 0 : i32
    %c0_i32_0 = arith.constant 0 : i32
    %c0_i32_1 = arith.constant 0 : i32
    return %arg0, %arg1, %c0_i32, %c0_i32_0 : i32, i32, i32, i32
  }
}

</mosaic_0001>

<llo_original>
// kernel: _lambda_.2
$region0: #{_lambda_.2}
  #allocation0 [shape = 'u32[]', space=smem, size = 0x4, offset = 0x4, fixed_abs, tag = 'smem constant byte address 0x4 - core index']
  #allocation1 [shape = 'u32[144,128]{1,0:T(1,128)}', space=vmem, size = 0x12000, scoped, tag = 'internal scratch']
  %s0 = inlined_call_operand.vmem [shape: f32[5,256], index: 0, kind: input, shape index: {}]
  %s1 = inlined_call_operand.vmem [shape: f32[256,128], index: 1, kind: input, shape index: {}]
  %s2 = inlined_call_operand.vmem [shape: f32[5,1], index: 2, kind: input, shape index: {}]
  %s3 = inlined_call_operand.vmem [shape: f32[5,128], index: 3, kind: output, shape index: {}]
  %s4 = sld [smem:[#allocation0]]
  $region22: #{_lambda_.2} parent=0
    _
  %s6 = ssub.s32 1, %s4
  %s7 = scalar_select 0, %s6, %s4
  // Predicated region
  $region2: #{_lambda_.2} parent=0 // pred_check
    _
  $region3: #{_lambda_.2} parent=0 // pred_check_branch
    %9 = sbr.rel (0) target = $region5
  $region4: #{_lambda_.2} parent=0 // pred_region
    _
  $region5: #{_lambda_.2} parent=0 // pred_fallthru
    _
  // Predicated region
  $region6: #{_lambda_.2} parent=0 // pred_check
    _
  $region7: #{_lambda_.2} parent=0 // pred_check_branch
    %11 = sbr.rel (0) target = $region9
  $region8: #{_lambda_.2} parent=0 // pred_region
    _
  $region9: #{_lambda_.2} parent=0 // pred_fallthru
    _
  // Predicated region
  $region10: #{_lambda_.2} parent=0 // pred_check
    _
  $region11: #{_lambda_.2} parent=0 // pred_check_branch
    %13 = sbr.rel (0) target = $region13
  $region12: #{_lambda_.2} parent=0 // pred_region
    _
  $region13: #{_lambda_.2} parent=0 // pred_fallthru
    _
  %v14 = vld [vmem:[%s0] sm:$0x1f]
  %v15 = vld [vmem:[%s0 + $0x8] sm:$0x1f]
  %v16 = vld [vmem:[%s1] sm:$0xff]
  %v17 = vld [vmem:[%s1 + $0x8] sm:$0xff]
  %v18 = vld [vmem:[%s1 + $0x10] sm:$0xff]
  %v19 = vld [vmem:[%s1 + $0x18] sm:$0xff]
  %v20 = vld [vmem:[%s1 + $0x20] sm:$0xff]
  %v21 = vld [vmem:[%s1 + $0x28] sm:$0xff]
  %v22 = vld [vmem:[%s1 + $0x30] sm:$0xff]
  %v23 = vld [vmem:[%s1 + $0x38] sm:$0xff]
  %v24 = vld [vmem:[%s1 + $0x40] sm:$0xff]
  %v25 = vld [vmem:[%s1 + $0x48] sm:$0xff]
  %v26 = vld [vmem:[%s1 + $0x50] sm:$0xff]
  %v27 = vld [vmem:[%s1 + $0x58] sm:$0xff]
  %v28 = vld [vmem:[%s1 + $0x60] sm:$0xff]
  %v29 = vld [vmem:[%s1 + $0x68] sm:$0xff]
  %v30 = vld [vmem:[%s1 + $0x70] sm:$0xff]
  %v31 = vld [vmem:[%s1 + $0x78] sm:$0xff]
  %v32 = vld [vmem:[%s1 + $0x80] sm:$0xff]
  %v33 = vld [vmem:[%s1 + $0x88] sm:$0xff]
  %v34 = vld [vmem:[%s1 + $0x90] sm:$0xff]
  %v35 = vld [vmem:[%s1 + $0x98] sm:$0xff]
  %v36 = vld [vmem:[%s1 + $0xa0] sm:$0xff]
  %v37 = vld [vmem:[%s1 + $0xa8] sm:$0xff]
  %v38 = vld [vmem:[%s1 + $0xb0] sm:$0xff]
  %v39 = vld [vmem:[%s1 + $0xb8] sm:$0xff]
  %v40 = vld [vmem:[%s1 + $0xc0] sm:$0xff]
  %v41 = vld [vmem:[%s1 + $0xc8] sm:$0xff]
  %v42 = vld [vmem:[%s1 + $0xd0] sm:$0xff]
  %v43 = vld [vmem:[%s1 + $0xd8] sm:$0xff]
  %v44 = vld [vmem:[%s1 + $0xe0] sm:$0xff]
  %v45 = vld [vmem:[%s1 + $0xe8] sm:$0xff]
  %v46 = vld [vmem:[%s1 + $0xf0] sm:$0xff]
  %v47 = vld [vmem:[%s1 + $0xf8] sm:$0xff]
  %v48 = vld [vmem:[%s2] sm:$0x1f]
  %50 = vset.pattern.permute.xlu0 0
  %51 = vperm.xlu0 %50, %v48
  %v52 = vpop.permute.xlu0 %51
  %54 = vmatprep.subr.mxu0 0.0
  %55 = vmatpush1.msra.mxu0 %v16
  %56 = vmatprep.subr.mxu0 0.0
  %57 = vmatpush1.msra.mxu0 %v17
  %58 = vmatprep.subr.mxu0 0.0
  %59 = vmatpush1.msra.mxu0 %v18
  %60 = vmatprep.subr.mxu0 0.0
  %61 = vmatpush1.msra.mxu0 %v19
  %62 = vmatprep.subr.mxu0 0.0
  %63 = vmatpush1.msra.mxu0 %v20
  %64 = vmatprep.subr.mxu0 0.0
  %65 = vmatpush1.msra.mxu0 %v21
  %66 = vmatprep.subr.mxu0 0.0
  %67 = vmatpush1.msra.mxu0 %v22
  %68 = vmatprep.subr.mxu0 0.0
  %69 = vmatpush1.msra.mxu0 %v23
  %70 = vmatprep.subr.mxu0 0.0
  %71 = vmatpush1.msra.mxu0 %v24
  %72 = vmatprep.subr.mxu0 0.0
  %73 = vmatpush1.msra.mxu0 %v25
  %74 = vmatprep.subr.mxu0 0.0
  %75 = vmatpush1.msra.mxu0 %v26
  %76 = vmatprep.subr.mxu0 0.0
  %77 = vmatpush1.msra.mxu0 %v27
  %78 = vmatprep.subr.mxu0 0.0
  %79 = vmatpush1.msra.mxu0 %v28
  %80 = vmatprep.subr.mxu0 0.0
  %81 = vmatpush1.msra.mxu0 %v29
  %82 = vmatprep.subr.mxu0 0.0
  %83 = vmatpush1.msra.mxu0 %v30
  %84 = vmatprep.subr.mxu0 0.0
  %85 = vmatpush1.msra.mxu0 %v31
  %86 = vmatprep.subr.mxu0 0.0
  %87 = vmatpush1.msra.mxu0 %v32
  %88 = vmatprep.subr.mxu0 0.0
  %89 = vmatpush1.msra.mxu0 %v33
  %90 = vmatprep.subr.mxu0 0.0
  %91 = vmatpush1.msra.mxu0 %v34
  %92 = vmatprep.subr.mxu0 0.0
  %93 = vmatpush1.msra.mxu0 %v35
  %94 = vmatprep.subr.mxu0 0.0
  %95 = vmatpush1.msra.mxu0 %v36
  %96 = vmatprep.subr.mxu0 0.0
  %97 = vmatpush1.msra.mxu0 %v37
  %98 = vmatprep.subr.mxu0 0.0
  %99 = vmatpush1.msra.mxu0 %v38
  %100 = vmatprep.subr.mxu0 0.0
  %101 = vmatpush1.msra.mxu0 %v39
  %102 = vmatprep.subr.mxu0 0.0
  %103 = vmatpush1.msra.mxu0 %v40
  %104 = vmatprep.subr.mxu0 0.0
  %105 = vmatpush1.msra.mxu0 %v41
  %106 = vmatprep.subr.mxu0 0.0
  %107 = vmatpush1.msra.mxu0 %v42
  %108 = vmatprep.subr.mxu0 0.0
  %109 = vmatpush1.msra.mxu0 %v43
  %110 = vmatprep.subr.mxu0 0.0
  %111 = vmatpush1.msra.mxu0 %v44
  %112 = vmatprep.subr.mxu0 0.0
  %113 = vmatpush1.msra.mxu0 %v45
  %114 = vmatprep.subr.mxu0 0.0
  %115 = vmatpush1.msra.mxu0 %v46
  %116 = vmatprep.subr.mxu0 0.0
  %117 = vmatpush1.msra.mxu0 %v47
  %118 = vmatprep.mubr.f32.mxu0 %v15
  %119 = vmatmul.mubr.f32.gmra.mrb[0].mxu0 %v14
  %v120 = vpop.f32.mrb[0].mxu0
  %v121 = vadd.f32 %v52, %v120
  %v122 = vpop.f32.mrb[0].mxu0
  %123 = vdwg.mxu0
  %124 = vst [vmem:[%s3] sm:$0x1f] %v121
  // Predicated region
  $region14: #{_lambda_.2} parent=0 // pred_check
    _
  $region15: #{_lambda_.2} parent=0 // pred_check_branch
    %126 = sbr.rel (0) target = $region17
  $region16: #{_lambda_.2} parent=0 // pred_region
    _
  $region17: #{_lambda_.2} parent=0 // pred_fallthru
    _
  // Predicated region
  $region18: #{_lambda_.2} parent=0 // pred_check
    _
  $region19: #{_lambda_.2} parent=0 // pred_check_branch
    %128 = sbr.rel (0) target = $region21
  $region20: #{_lambda_.2} parent=0 // pred_region
    _
  $region21: #{_lambda_.2} parent=0 // pred_fallthru
    _

// kernel: _lambda_.3
$region0: #{_lambda_.3}
  #allocation0 [shape = 'u32[]', space=smem, size = 0x4, offset = 0x4, fixed_abs, tag = 'smem constant byte address 0x4 - core index']
  #allocation1 [shape = 'u32[144,128]{1,0:T(1,128)}', space=vmem, size = 0x12000, scoped, tag = 'internal scratch']
  %s0 = inlined_call_operand.vmem [shape: f32[10,8,8,2], index: 0, kind: input, shape index: {}]
  %s1 = inlined_call_operand.vmem [shape: f32[2,8], index: 1, kind: input, shape index: {}]
  %s2 = inlined_call_operand.vmem [shape: f32[8,8,8,8], index: 2, kind: input, shape index: {}]
  %s3 = inlined_call_operand.vmem [shape: f32[4,5], index: 3, kind: input, shape index: {}]
  %s4 = inlined_call_operand.vmem [shape: f32[1,5], index: 4, kind: input, shape index: {}]
  %s5 = inlined_call_operand.vmem [shape: f32[10,8,8,8], index: 5, kind: output, shape index: {}]
  %s6 = sld [smem:[#allocation0]]
  $region61: #{_lambda_.3} parent=0
    _
  %s8 = ssub.s32 1, %s6
  %s9 = scalar_select 0, %s8, %s6
  $region1: #{_lambda_.3} parent=0
    #allocation2 [shape = 'u8[2048]{0}', space=smem, size = 0x800, scoped, tag = 'input window, operand 3, single buffered']
    #allocation3 [shape = 's32[2]{0}', space=sflag, size = 0x8, scoped, tag = 'scoped memory for _lambda_.3']
    #allocation4 [shape = 'u8[512]{0}', space=smem, size = 0x200, scoped, tag = 'input window, operand 4, single buffered']
    #allocation5 [shape = 's32[1]{0}', space=sflag, size = 0x4, scoped, tag = 'scoped memory for _lambda_.3']
    %10 = vsyncpa [#allocation3], 0
    %11 = vsyncpa [#allocation5], 0
    loop: start=0, step=1, limit=4
    $region2: #{_lambda_.3} parent=1 // loop_pre_header
      _
    $region3: #{_lambda_.3} parent=1 // loop_header
      %s13 = sphi 0, %s17
      %p14 = scmp.ge.s32.totalorder %s13, 4
      %s20 = sphi 0, %s32
      %s21 = sphi 0, %s28
      %s22 = sphi 0, %s20
      %s23 = sphi 0, %s21
      %s24 = sphi 0, %s22
      %s25 = sphi 0, %s23
      %s37 = sphi 0, %s39
      %s40 = sphi 0, %s37
      %s41 = sphi 0, %s40
      %s57 = sphi 0, %s41
      %s61 = sphi 0, %s61
      %s63 = sphi 0, %s61
      %s64 = sphi 0, %s63
      %s78 = sphi 0, %s64
      %s86 = sphi 0, %s88
      %s89 = sphi 0, %s86
      %s90 = sphi 0, %s89
      %s106 = sphi 0, %s90
      %s110 = sphi 0, %s110
      %s112 = sphi 0, %s110
      %s113 = sphi 0, %s112
      %s127 = sphi 0, %s113
      %s131 = sphi 0, %s131
      %s133 = sphi 0, %s131
      %s134 = sphi 0, %s133
      %s148 = sphi 0, %s134
      %s156 = sphi 0, %s158
      %s159 = sphi 0, %s156
      %s160 = sphi 0, %s159
      %s176 = sphi 0, %s160
    $region4: #{_lambda_.3} parent=1 // loop_header_branch
      %16 = sbr.rel (%p14) target = $region8
    $region5: #{_lambda_.3} parent=1 // loop_body
      %s18 = ssub.s32 %s13, 1
      %s19 = ssub.s32 %s13, 2
      %s26 = sadd.s32 1, %s21
      %p27 = scmp.ge.s32.totalorder %s26, 1
      %s28 = scalar_select %p27, 0, %s26
      %s29 = sadd.s32 1, %s20
      %s30 = scalar_select %p27, %s29, %s20
      %p31 = scmp.ge.s32.totalorder %s30, 2
      %s32 = scalar_select %p31, 0, %s30
      %s33 = ssub.s32 %s20, %s32
      %s34 = ssub.s32 %s21, %s28
      %s35 = sor.u32 %s33, %s34
      %p36 = scmp.eq.s32.totalorder %s35, 0
      %s38 = sadd.s32 %s37, 1
      %s39 = scalar_select %p36, %s37, %s38
      %p42 = pneg %p36
      %p43 = scmp.eq.s32.totalorder %s13, 1
      %p44 = por %p42, %p43
      %p45 = scmp.ne.s32.totalorder %s37, %s40
      %p46 = scmp.eq.s32.totalorder %s13, 0
      %p47 = por %p45, %p46
      %p48 = scmp.ne.s32.totalorder %s37, %s40
      %p49 = scmp.eq.s32.totalorder %s18, 1
      %p50 = por %p48, %p49
      %p51 = scmp.ne.s32.totalorder %s40, %s41
      %p52 = scmp.eq.s32.totalorder %s18, 0
      %p53 = por %p51, %p52
      %p54 = scmp.ne.s32.totalorder %s40, %s41
      %p55 = scmp.eq.s32.totalorder %s19, 1
      %p56 = por %p54, %p55
      %p58 = scmp.ne.s32.totalorder %s41, %s57
      %p59 = scmp.eq.s32.totalorder %s19, 0
      %p60 = por %p58, %p59
      %s62 = sadd.s32 %s61, 1
      %p65 = scmp.eq.s32.totalorder %s13, 1
      %p66 = scmp.ne.s32.totalorder %s61, %s63
      %p67 = scmp.eq.s32.totalorder %s13, 0
      %p68 = por %p66, %p67
      %p69 = scmp.ne.s32.totalorder %s61, %s63
      %p70 = scmp.eq.s32.totalorder %s18, 1
      %p71 = por %p69, %p70
      %p72 = scmp.ne.s32.totalorder %s63, %s64
      %p73 = scmp.eq.s32.totalorder %s18, 0
      %p74 = por %p72, %p73
      %p75 = scmp.ne.s32.totalorder %s63, %s64
      %p76 = scmp.eq.s32.totalorder %s19, 1
      %p77 = por %p75, %p76
      %p79 = scmp.ne.s32.totalorder %s64, %s78
      %p80 = scmp.eq.s32.totalorder %s19, 0
      %p81 = por %p79, %p80
      %s82 = ssub.s32 %s20, %s32
      %s83 = ssub.s32 %s21, %s28
      %s84 = sor.u32 %s82, %s83
      %p85 = scmp.eq.s32.totalorder %s84, 0
      %s87 = sadd.s32 %s86, 1
      %s88 = scalar_select %p85, %s86, %s87
      %p91 = pneg %p85
      %p92 = scmp.eq.s32.totalorder %s13, 1
      %p93 = por %p91, %p92
      %p94 = scmp.ne.s32.totalorder %s86, %s89
      %p95 = scmp.eq.s32.totalorder %s13, 0
      %p96 = por %p94, %p95
      %p97 = scmp.ne.s32.totalorder %s86, %s89
      %p98 = scmp.eq.s32.totalorder %s18, 1
      %p99 = por %p97, %p98
      %p100 = scmp.ne.s32.totalorder %s89, %s90
      %p101 = scmp.eq.s32.totalorder %s18, 0
      %p102 = por %p100, %p101
      %p103 = scmp.ne.s32.totalorder %s89, %s90
      %p104 = scmp.eq.s32.totalorder %s19, 1
      %p105 = por %p103, %p104
      %p107 = scmp.ne.s32.totalorder %s90, %s106
      %p108 = scmp.eq.s32.totalorder %s19, 0
      %p109 = por %p107, %p108
      %s111 = sadd.s32 %s110, 1
      %p114 = scmp.eq.s32.totalorder %s13, 1
      %p115 = scmp.ne.s32.totalorder %s110, %s112
      %p116 = scmp.eq.s32.totalorder %s13, 0
      %p117 = por %p115, %p116
      %p118 = scmp.ne.s32.totalorder %s110, %s112
      %p119 = scmp.eq.s32.totalorder %s18, 1
      %p120 = por %p118, %p119
      %p121 = scmp.ne.s32.totalorder %s112, %s113
      %p122 = scmp.eq.s32.totalorder %s18, 0
      %p123 = por %p121, %p122
      %p124 = scmp.ne.s32.totalorder %s112, %s113
      %p125 = scmp.eq.s32.totalorder %s19, 1
      %p126 = por %p124, %p125
      %p128 = scmp.ne.s32.totalorder %s113, %s127
      %p129 = scmp.eq.s32.totalorder %s19, 0
      %p130 = por %p128, %p129
      %s132 = sadd.s32 %s131, 1
      %p135 = scmp.eq.s32.totalorder %s13, 1
      %p136 = scmp.ne.s32.totalorder %s131, %s133
      %p137 = scmp.eq.s32.totalorder %s13, 0
      %p138 = por %p136, %p137
      %p139 = scmp.ne.s32.totalorder %s131, %s133
      %p140 = scmp.eq.s32.totalorder %s18, 1
      %p141 = por %p139, %p140
      %p142 = scmp.ne.s32.totalorder %s133, %s134
      %p143 = scmp.eq.s32.totalorder %s18, 0
      %p144 = por %p142, %p143
      %p145 = scmp.ne.s32.totalorder %s133, %s134
      %p146 = scmp.eq.s32.totalorder %s19, 1
      %p147 = por %p145, %p146
      %p149 = scmp.ne.s32.totalorder %s134, %s148
      %p150 = scmp.eq.s32.totalorder %s19, 0
      %p151 = por %p149, %p150
      %s152 = ssub.s32 %s20, %s32
      %s153 = ssub.s32 %s21, %s28
      %s154 = sor.u32 %s152, %s153
      %p155 = scmp.eq.s32.totalorder %s154, 0
      %s157 = sadd.s32 %s156, 1
      %s158 = scalar_select %p155, %s156, %s157
      %p161 = pneg %p155
      %p162 = scmp.eq.s32.totalorder %s13, 1
      %p163 = por %p161, %p162
      %p164 = scmp.ne.s32.totalorder %s156, %s159
      %p165 = scmp.eq.s32.totalorder %s13, 0
      %p166 = por %p164, %p165
      %p167 = scmp.ne.s32.totalorder %s156, %s159
      %p168 = scmp.eq.s32.totalorder %s18, 1
      %p169 = por %p167, %p168
      %p170 = scmp.ne.s32.totalorder %s159, %s160
      %p171 = scmp.eq.s32.totalorder %s18, 0
      %p172 = por %p170, %p171
      %p173 = scmp.ne.s32.totalorder %s159, %s160
      %p174 = scmp.eq.s32.totalorder %s19, 1
      %p175 = por %p173, %p174
      %p177 = scmp.ne.s32.totalorder %s160, %s176
      %p178 = scmp.eq.s32.totalorder %s19, 0
      %p179 = por %p177, %p178
      %p180 = scmp.le.s32.totalorder 1, %s13
      %p181 = scmp.lt.s32.totalorder %s13, 3
      %p182 = pnand %p180, %p181
      %p183 = pneg %p182
      // Predicated region
      $region9: #{_lambda_.3} parent=5 // pred_check
        _
      $region10: #{_lambda_.3} parent=5 // pred_check_branch
        %185 = sbr.rel (%p182) target = $region12
      $region11: #{_lambda_.3} parent=5 // pred_region
        %s186 = ssub.s32 %s13, 1
        // Predicated region
        $region13: #{_lambda_.3} parent=11 // pred_check
          %p187 = pneg %p74
        $region14: #{_lambda_.3} parent=11 // pred_check_branch
          %189 = sbr.rel (%p187) target = $region16
        $region15: #{_lambda_.3} parent=11 // pred_region
          _
        $region16: #{_lambda_.3} parent=11 // pred_fallthru
          _
        // Predicated region
        $region17: #{_lambda_.3} parent=11 // pred_check
          %p190 = pneg %p123
        $region18: #{_lambda_.3} parent=11 // pred_check_branch
          %192 = sbr.rel (%p190) target = $region20
        $region19: #{_lambda_.3} parent=11 // pred_region
          %s194 = ssub.s32 64, 64
          %195 = vsyncadd [#allocation3], %s194
          %s197 = sshll.u32 %s3, 4
          %s198 = int_to_ptr.vmem [resolvable:$true] %s197
          %200 = dma.vmem_to_smem %s198, 64, [#allocation2], [#allocation3]
        $region20: #{_lambda_.3} parent=11 // pred_fallthru
          _
        // Predicated region
        $region21: #{_lambda_.3} parent=11 // pred_check
          %p201 = pneg %p144
        $region22: #{_lambda_.3} parent=11 // pred_check_branch
          %203 = sbr.rel (%p201) target = $region24
        $region23: #{_lambda_.3} parent=11 // pred_region
          %s205 = ssub.s32 16, 16
          %206 = vsyncadd [#allocation5], %s205
          %s208 = sshll.u32 %s4, 4
          %s209 = int_to_ptr.vmem [resolvable:$true] %s208
          %211 = dma.vmem_to_smem %s209, 16, [#allocation4], [#allocation5]
        $region24: #{_lambda_.3} parent=11 // pred_fallthru
          _
      $region12: #{_lambda_.3} parent=5 // pred_fallthru
        _
      %p212 = scmp.lt.s32.totalorder %s13, 2
      // Predicated region
      $region25: #{_lambda_.3} parent=5 // pred_check
        %p213 = pneg %p212
      $region26: #{_lambda_.3} parent=5 // pred_check_branch
        %215 = sbr.rel (%p213) target = $region28
      $region27: #{_lambda_.3} parent=5 // pred_region
        // Predicated region
        $region29: #{_lambda_.3} parent=27 // pred_check
          %p216 = pneg %p47
        $region30: #{_lambda_.3} parent=27 // pred_check_branch
          %218 = sbr.rel (%p216) target = $region32
        $region31: #{_lambda_.3} parent=27 // pred_region
          %s219 = smul.u32 5, %s20
          %s220 = smul.u32 8, %s21
          %p221 = scmp.lt.s32.totalorder %s219, 9
          %s222 = scalar_select %p221, %s219, 9
          %p223 = scmp.lt.s32.totalorder %s220, 7
          %s224 = scalar_select %p223, %s220, 7
          %s225 = smul.addr %s222, 8
          %s226 = sadd.s32 %s224, %s225
          %s227 = smul.addr %s226, 8
          %s228 = scalar_lea.vmem %s0, %s227
          %s229 = smul.u32 5, %s20
          %s230 = smul.u32 8, %s21
        $region32: #{_lambda_.3} parent=27 // pred_fallthru
          _
        // Predicated region
        $region33: #{_lambda_.3} parent=27 // pred_check
          %p231 = pneg %p96
        $region34: #{_lambda_.3} parent=27 // pred_check_branch
          %233 = sbr.rel (%p231) target = $region36
        $region35: #{_lambda_.3} parent=27 // pred_region
          %s234 = smul.u32 4, %s20
          %s235 = smul.u32 8, %s21
          %p236 = scmp.lt.s32.totalorder %s234, 7
          %s237 = scalar_select %p236, %s234, 7
          %p238 = scmp.lt.s32.totalorder %s235, 7
          %s239 = scalar_select %p238, %s235, 7
          %s240 = smul.addr %s237, 8
          %s241 = sadd.s32 %s239, %s240
          %s242 = smul.addr %s241, 8
          %s243 = scalar_lea.vmem %s2, %s242
          %s244 = smul.u32 4, %s20
          %s245 = smul.u32 8, %s21
        $region36: #{_lambda_.3} parent=27 // pred_fallthru
          _
      $region28: #{_lambda_.3} parent=5 // pred_fallthru
        _
      %p246 = scmp.le.s32.totalorder 1, %s13
      %p247 = scmp.lt.s32.totalorder %s13, 3
      %p248 = pnand %p246, %p247
      %p249 = pneg %p248
      // Predicated region
      $region37: #{_lambda_.3} parent=5 // pred_check
        _
      $region38: #{_lambda_.3} parent=5 // pred_check_branch
        %251 = sbr.rel (%p248) target = $region40
      $region39: #{_lambda_.3} parent=5 // pred_region
        %s252 = ssub.s32 %s13, 1
        // Predicated region
        $region41: #{_lambda_.3} parent=39 // pred_check
          %p253 = pneg %p123
        $region42: #{_lambda_.3} parent=39 // pred_check_branch
          %255 = sbr.rel (%p253) target = $region44
        $region43: #{_lambda_.3} parent=39 // pred_region
          %256 = dma.done [#allocation3], 64
        $region44: #{_lambda_.3} parent=39 // pred_fallthru
          _
        // Predicated region
        $region45: #{_lambda_.3} parent=39 // pred_check
          %p257 = pneg %p144
        $region46: #{_lambda_.3} parent=39 // pred_check_branch
          %259 = sbr.rel (%p257) target = $region48
        $region47: #{_lambda_.3} parent=39 // pred_region
          %260 = dma.done [#allocation5], 16
        $region48: #{_lambda_.3} parent=39 // pred_fallthru
          _
        %261 = sfence
        %s262 = smul.u32 5, %s22
        %s263 = smul.u32 8, %s23
        %p264 = scmp.lt.s32.totalorder %s262, 9
        %s265 = scalar_select %p264, %s262, 9
        %p266 = scmp.lt.s32.totalorder %s263, 7
        %s267 = scalar_select %p266, %s263, 7
        %s268 = smul.addr %s265, 8
        %s269 = sadd.s32 %s267, %s268
        %s270 = smul.addr %s269, 8
        %s271 = scalar_lea.vmem %s0, %s270
        %p272 = pneg %p53
        %p273 = pneg %p50
        %p274 = pneg %p74
        %p275 = pneg %p71
        %s276 = smul.u32 4, %s22
        %s277 = smul.u32 8, %s23
        %p278 = scmp.lt.s32.totalorder %s276, 7
        %s279 = scalar_select %p278, %s276, 7
        %p280 = scmp.lt.s32.totalorder %s277, 7
        %s281 = scalar_select %p280, %s277, 7
        %s282 = smul.addr %s279, 8
        %s283 = sadd.s32 %s281, %s282
        %s284 = smul.addr %s283, 8
        %s285 = scalar_lea.vmem %s2, %s284
        %p286 = pneg %p102
        %p287 = pneg %p99
        %p288 = pneg %p123
        %p289 = pneg %p120
        %p290 = pneg %p144
        %p291 = pneg %p141
        %p292 = pneg %p172
        %p293 = pneg %p169
        %s294 = smul.u32 5, %s22
        %s295 = smul.u32 8, %s23
        %p296 = scmp.lt.s32.totalorder %s294, 9
        %s297 = scalar_select %p296, %s294, 9
        %p298 = scmp.lt.s32.totalorder %s295, 7
        %s299 = scalar_select %p298, %s295, 7
        %s300 = smul.addr %s297, 8
        %s301 = sadd.s32 %s299, %s300
        %s302 = smul.addr %s301, 8
        %s303 = scalar_lea.vmem %s5, %s302
        %s304 = smul.u32 5, %s22
        %s305 = smul.u32 8, %s23
        %p306 = scmp.lt.s32.totalorder %s304, 9
        %s307 = scalar_select %p306, %s304, 9
        %p308 = scmp.lt.s32.totalorder %s305, 7
        %s309 = scalar_select %p308, %s305, 7
        %s310 = smul.addr %s307, 8
        %s311 = sadd.s32 %s309, %s310
        %s312 = smul.addr %s311, 8
        %s313 = scalar_lea.vmem %s0, %s312
        %s314 = smul.u32 5, %s22
        %s315 = smul.u32 8, %s23
        %s316 = smul.u32 4, %s22
        %s317 = smul.u32 8, %s23
        %p318 = scmp.lt.s32.totalorder %s316, 7
        %s319 = scalar_select %p318, %s316, 7
        %p320 = scmp.lt.s32.totalorder %s317, 7
        %s321 = scalar_select %p320, %s317, 7
        %s322 = smul.addr %s319, 8
        %s323 = sadd.s32 %s321, %s322
        %s324 = smul.addr %s323, 8
        %s325 = scalar_lea.vmem %s2, %s324
        %s326 = smul.u32 4, %s22
        %s327 = smul.u32 8, %s23
        %s328 = smul.u32 5, %s22
        %s329 = smul.u32 8, %s23
        %p330 = scmp.lt.s32.totalorder %s328, 9
        %s331 = scalar_select %p330, %s328, 9
        %p332 = scmp.lt.s32.totalorder %s329, 7
        %s333 = scalar_select %p332, %s329, 7
        %s334 = smul.addr %s331, 8
        %s335 = sadd.s32 %s333, %s334
        %s336 = smul.addr %s335, 8
        %s337 = scalar_lea.vmem %s5, %s336
        %s338 = smul.u32 5, %s22
        %s339 = smul.u32 8, %s23
        %v340 = vld [vmem:[%s1] sm:$0x3]
        %v341 = vld [vmem:[%s313] sm:$0xff]
        %v342 = vld [vmem:[%s313 + $0x8] sm:$0xff]
        %v343 = vld [vmem:[%s313 + $0x10] sm:$0xff]
        %v344 = vld [vmem:[%s313 + $0x18] sm:$0xff]
        %v345 = vld [vmem:[%s313 + $0x20] sm:$0xff]
        %v346 = vld [vmem:[%s313 + $0x28] sm:$0xff]
        %v347 = vld [vmem:[%s313 + $0x30] sm:$0xff]
        %v348 = vld [vmem:[%s313 + $0x38] sm:$0xff]
        %vm349 = vcmask 15360
        %v351 = vsel %vm349, %v341, 0
        %v354 = vsel %vm349, %v342, 0
        %v357 = vsel %vm349, %v343, 0
        %v360 = vsel %vm349, %v344, 0
        %v363 = vsel %vm349, %v345, 0
        %v366 = vsel %vm349, %v346, 0
        %v369 = vsel %vm349, %v347, 0
        %v372 = vsel %vm349, %v348, 0
        %vm374 = vcmask 1041408
        %v376 = vsel %vm374, %v340, 0
        %378 = vmatprep.subr.mxu0 0.0
        %379 = vmatpush1.msra.mxu0 %v376
        %380 = vmatprep.subr.mxu0 0.0
        %381 = vmatpush1.msra.mxu0 0.0
        %382 = vmatprep.subr.mxu0 0.0
        %383 = vmatpush1.msra.mxu0 0.0
        %384 = vmatprep.subr.mxu0 0.0
        %385 = vmatpush1.msra.mxu0 0.0
        %386 = vmatprep.subr.mxu0 0.0
        %387 = vmatpush1.msra.mxu0 0.0
        %388 = vmatprep.subr.mxu0 0.0
        %389 = vmatpush1.msra.mxu0 0.0
        %390 = vmatprep.subr.mxu0 0.0
        %391 = vmatpush1.msra.mxu0 0.0
        %392 = vmatprep.subr.mxu0 0.0
        %393 = vmatpush1.msra.mxu0 0.0
        %394 = vmatprep.subr.mxu0 0.0
        %395 = vmatpush1.msra.mxu0 0.0
        %396 = vmatprep.subr.mxu0 0.0
        %397 = vmatpush1.msra.mxu0 0.0
        %398 = vmatprep.subr.mxu0 0.0
        %399 = vmatpush1.msra.mxu0 0.0
        %400 = vmatprep.subr.mxu0 0.0
        %401 = vmatpush1.msra.mxu0 0.0
        %402 = vmatprep.subr.mxu0 0.0
        %403 = vmatpush1.msra.mxu0 0.0
        %404 = vmatprep.subr.mxu0 0.0
        %405 = vmatpush1.msra.mxu0 0.0
        %406 = vmatprep.subr.mxu0 0.0
        %407 = vmatpush1.msra.mxu0 0.0
        %408 = vmatprep.subr.mxu0 0.0
        %409 = vmatpush1.msra.mxu0 0.0
        %410 = vmatprep.subr.mxu0 0.0
        %411 = vmatpush1.msra.mxu0 0.0
        %412 = vmatprep.subr.mxu0 0.0
        %413 = vmatpush1.msra.mxu0 0.0
        %414 = vmatprep.subr.mxu0 0.0
        %415 = vmatpush1.msra.mxu0 0.0
        %416 = vmatprep.subr.mxu0 0.0
        %417 = vmatpush1.msra.mxu0 0.0
        %418 = vmatprep.subr.mxu0 0.0
        %419 = vmatpush1.msra.mxu0 0.0
        %420 = vmatprep.subr.mxu0 0.0
        %421 = vmatpush1.msra.mxu0 0.0
        %422 = vmatprep.subr.mxu0 0.0
        %423 = vmatpush1.msra.mxu0 0.0
        %424 = vmatprep.subr.mxu0 0.0
        %425 = vmatpush1.msra.mxu0 0.0
        %426 = vmatprep.subr.mxu0 0.0
        %427 = vmatpush1.msra.mxu0 0.0
        %428 = vmatprep.subr.mxu0 0.0
        %429 = vmatpush1.msra.mxu0 0.0
        %430 = vmatprep.subr.mxu0 0.0
        %431 = vmatpush1.msra.mxu0 0.0
        %432 = vmatprep.subr.mxu0 0.0
        %433 = vmatpush1.msra.mxu0 0.0
        %434 = vmatprep.subr.mxu0 0.0
        %435 = vmatpush1.msra.mxu0 0.0
        %436 = vmatprep.subr.mxu0 0.0
        %437 = vmatpush1.msra.mxu0 0.0
        %438 = vmatprep.subr.mxu0 0.0
        %439 = vmatpush1.msra.mxu0 0.0
        %440 = vmatprep.subr.mxu0 0.0
        %441 = vmatpush1.msra.mxu0 0.0
        %442 = vmatprep.mubr.f32.mxu0 0.0
        %443 = vmatmul.mubr.f32.gmra.mrb[0].mxu0 %v351
        %v444 = vpop.f32.mrb[0].mxu0
        %v445 = vadd.f32 0.0, %v444
        %v446 = vpop.f32.mrb[0].mxu0
        %447 = vmatprep.mubr.f32.mxu0 0.0
        %448 = vmatmul.mubr.f32.gmra.mrb[0].mxu0 %v354
        %v449 = vpop.f32.mrb[0].mxu0
        %v450 = vadd.f32 0.0, %v449
        %v451 = vpop.f32.mrb[0].mxu0
        %452 = vmatprep.mubr.f32.mxu0 0.0
        %453 = vmatmul.mubr.f32.gmra.mrb[0].mxu0 %v357
        %v454 = vpop.f32.mrb[0].mxu0
        %v455 = vadd.f32 0.0, %v454
        %v456 = vpop.f32.mrb[0].mxu0
        %457 = vmatprep.mubr.f32.mxu0 0.0
        %458 = vmatmul.mubr.f32.gmra.mrb[0].mxu0 %v360
        %v459 = vpop.f32.mrb[0].mxu0
        %v460 = vadd.f32 0.0, %v459
        %v461 = vpop.f32.mrb[0].mxu0
        %462 = vmatprep.mubr.f32.mxu0 0.0
        %463 = vmatmul.mubr.f32.gmra.mrb[0].mxu0 %v363
        %v464 = vpop.f32.mrb[0].mxu0
        %v465 = vadd.f32 0.0, %v464
        %v466 = vpop.f32.mrb[0].mxu0
        %467 = vmatprep.mubr.f32.mxu0 0.0
        %468 = vmatmul.mubr.f32.gmra.mrb[0].mxu0 %v366
        %v469 = vpop.f32.mrb[0].mxu0
        %v470 = vadd.f32 0.0, %v469
        %v471 = vpop.f32.mrb[0].mxu0
        %472 = vmatprep.mubr.f32.mxu0 0.0
        %473 = vmatmul.mubr.f32.gmra.mrb[0].mxu0 %v369
        %v474 = vpop.f32.mrb[0].mxu0
        %v475 = vadd.f32 0.0, %v474
        %v476 = vpop.f32.mrb[0].mxu0
        %477 = vmatprep.mubr.f32.mxu0 0.0
        %478 = vmatmul.mubr.f32.gmra.mrb[0].mxu0 %v372
        %v479 = vpop.f32.mrb[0].mxu0
        %v480 = vadd.f32 0.0, %v479
        %v481 = vpop.f32.mrb[0].mxu0
        %482 = vdwg.mxu0
        %s483 = sld [smem:[#allocation4]]
        %v484 = vstv %s483
        %v485 = vadd.f32 %v445, %v484
        %v486 = vadd.f32 %v450, %v484
        %v487 = vadd.f32 %v455, %v484
        %v488 = vadd.f32 %v460, %v484
        %v489 = vadd.f32 %v465, %v484
        %v490 = vadd.f32 %v470, %v484
        %v491 = vadd.f32 %v475, %v484
        %v492 = vadd.f32 %v480, %v484
        %s493 = sld [smem:[#allocation2]]
        %v494 = vld [vmem:[%s325] sm:$0xff]
        %v495 = vld [vmem:[%s325 + $0x8] sm:$0xff]
        %v496 = vld [vmem:[%s325 + $0x10] sm:$0xff]
        %v497 = vld [vmem:[%s325 + $0x18] sm:$0xff]
        %v498 = vld [vmem:[%s325 + $0x20] sm:$0xff]
        %v499 = vld [vmem:[%s325 + $0x28] sm:$0xff]
        %v500 = vld [vmem:[%s325 + $0x30] sm:$0xff]
        %v501 = vld [vmem:[%s325 + $0x38] sm:$0xff]
        %v502 = vstv %s493
        %v503 = vmul.f32 %v502, %v494
        %v504 = vmul.f32 %v502, %v495
        %v505 = vmul.f32 %v502, %v496
        %v506 = vmul.f32 %v502, %v497
        %v507 = vmul.f32 %v502, %v498
        %v508 = vmul.f32 %v502, %v499
        %v509 = vmul.f32 %v502, %v500
        %v510 = vmul.f32 %v502, %v501
        %v511 = vadd.f32 %v485, %v503
        %v512 = vadd.f32 %v486, %v504
        %v513 = vadd.f32 %v487, %v505
        %v514 = vadd.f32 %v488, %v506
        %v515 = vadd.f32 %v489, %v507
        %v516 = vadd.f32 %v490, %v508
        %v517 = vadd.f32 %v491, %v509
        %v518 = vadd.f32 %v492, %v510
        %s519 = sld [smem:[#allocation2 + $0x80]]
        %s520 = scalar_lea.vmem %s325, 64
        %v521 = vld [vmem:[%s520] sm:$0xff]
        %v522 = vld [vmem:[%s520 + $0x8] sm:$0xff]
        %v523 = vld [vmem:[%s520 + $0x10] sm:$0xff]
        %v524 = vld [vmem:[%s520 + $0x18] sm:$0xff]
        %v525 = vld [vmem:[%s520 + $0x20] sm:$0xff]
        %v526 = vld [vmem:[%s520 + $0x28] sm:$0xff]
        %v527 = vld [vmem:[%s520 + $0x30] sm:$0xff]
        %v528 = vld [vmem:[%s520 + $0x38] sm:$0xff]
        %v529 = vstv %s519
        %v530 = vmul.f32 %v529, %v521
        %v531 = vmul.f32 %v529, %v522
        %v532 = vmul.f32 %v529, %v523
        %v533 = vmul.f32 %v529, %v524
        %v534 = vmul.f32 %v529, %v525
        %v535 = vmul.f32 %v529, %v526
        %v536 = vmul.f32 %v529, %v527
        %v537 = vmul.f32 %v529, %v528
        %v538 = vadd.f32 %v511, %v530
        %v539 = vadd.f32 %v512, %v531
        %v540 = vadd.f32 %v513, %v532
        %v541 = vadd.f32 %v514, %v533
        %v542 = vadd.f32 %v515, %v534
        %v543 = vadd.f32 %v516, %v535
        %v544 = vadd.f32 %v517, %v536
        %v545 = vadd.f32 %v518, %v537
        %s546 = sld [smem:[#allocation2 + $0x100]]
        %s547 = scalar_lea.vmem %s325, 128
        %v548 = vld [vmem:[%s547] sm:$0xff]
        %v549 = vld [vmem:[%s547 + $0x8] sm:$0xff]
        %v550 = vld [vmem:[%s547 + $0x10] sm:$0xff]
        %v551 = vld [vmem:[%s547 + $0x18] sm:$0xff]
        %v552 = vld [vmem:[%s547 + $0x20] sm:$0xff]
        %v553 = vld [vmem:[%s547 + $0x28] sm:$0xff]
        %v554 = vld [vmem:[%s547 + $0x30] sm:$0xff]
        %v555 = vld [vmem:[%s547 + $0x38] sm:$0xff]
        %v556 = vstv %s546
        %v557 = vmul.f32 %v556, %v548
        %v558 = vmul.f32 %v556, %v549
        %v559 = vmul.f32 %v556, %v550
        %v560 = vmul.f32 %v556, %v551
        %v561 = vmul.f32 %v556, %v552
        %v562 = vmul.f32 %v556, %v553
        %v563 = vmul.f32 %v556, %v554
        %v564 = vmul.f32 %v556, %v555
        %v565 = vadd.f32 %v538, %v557
        %v566 = vadd.f32 %v539, %v558
        %v567 = vadd.f32 %v540, %v559
        %v568 = vadd.f32 %v541, %v560
        %v569 = vadd.f32 %v542, %v561
        %v570 = vadd.f32 %v543, %v562
        %v571 = vadd.f32 %v544, %v563
        %v572 = vadd.f32 %v545, %v564
        %s573 = sld [smem:[#allocation2 + $0x180]]
        %s574 = scalar_lea.vmem %s325, 192
        %v575 = vld [vmem:[%s574] sm:$0xff]
        %v576 = vld [vmem:[%s574 + $0x8] sm:$0xff]
        %v577 = vld [vmem:[%s574 + $0x10] sm:$0xff]
        %v578 = vld [vmem:[%s574 + $0x18] sm:$0xff]
        %v579 = vld [vmem:[%s574 + $0x20] sm:$0xff]
        %v580 = vld [vmem:[%s574 + $0x28] sm:$0xff]
        %v581 = vld [vmem:[%s574 + $0x30] sm:$0xff]
        %v582 = vld [vmem:[%s574 + $0x38] sm:$0xff]
        %v583 = vstv %s573
        %v584 = vmul.f32 %v583, %v575
        %v585 = vmul.f32 %v583, %v576
        %v586 = vmul.f32 %v583, %v577
        %v587 = vmul.f32 %v583, %v578
        %v588 = vmul.f32 %v583, %v579
        %v589 = vmul.f32 %v583, %v580
        %v590 = vmul.f32 %v583, %v581
        %v591 = vmul.f32 %v583, %v582
        %v592 = vadd.f32 %v565, %v584
        %v593 = vadd.f32 %v566, %v585
        %v594 = vadd.f32 %v567, %v586
        %v595 = vadd.f32 %v568, %v587
        %v596 = vadd.f32 %v569, %v588
        %v597 = vadd.f32 %v570, %v589
        %v598 = vadd.f32 %v571, %v590
        %v599 = vadd.f32 %v572, %v591
        %vm600 = vcmask 64512
        %601 = vst.msk [vmem:[%s337] sm:$0xff] %vm600, %v592
        %602 = vst.msk [vmem:[%s337 + $0x8] sm:$0xff] %vm600, %v593
        %603 = vst.msk [vmem:[%s337 + $0x10] sm:$0xff] %vm600, %v594
        %604 = vst.msk [vmem:[%s337 + $0x18] sm:$0xff] %vm600, %v595
        %605 = vst.msk [vmem:[%s337 + $0x20] sm:$0xff] %vm600, %v596
        %606 = vst.msk [vmem:[%s337 + $0x28] sm:$0xff] %vm600, %v597
        %607 = vst.msk [vmem:[%s337 + $0x30] sm:$0xff] %vm600, %v598
        %608 = vst.msk [vmem:[%s337 + $0x38] sm:$0xff] %vm600, %v599
        %s609 = scalar_lea.vmem %s313, 64
        %v610 = vld [vmem:[%s609] sm:$0xff]
        %v611 = vld [vmem:[%s609 + $0x8] sm:$0xff]
        %v612 = vld [vmem:[%s609 + $0x10] sm:$0xff]
        %v613 = vld [vmem:[%s609 + $0x18] sm:$0xff]
        %v614 = vld [vmem:[%s609 + $0x20] sm:$0xff]
        %v615 = vld [vmem:[%s609 + $0x28] sm:$0xff]
        %v616 = vld [vmem:[%s609 + $0x30] sm:$0xff]
        %v617 = vld [vmem:[%s609 + $0x38] sm:$0xff]
        %v619 = vsel %vm349, %v610, 0
        %v622 = vsel %vm349, %v611, 0
        %v625 = vsel %vm349, %v612, 0
        %v628 = vsel %vm349, %v613, 0
        %v631 = vsel %vm349, %v614, 0
        %v634 = vsel %vm349, %v615, 0
        %v637 = vsel %vm349, %v616, 0
        %v640 = vsel %vm349, %v617, 0
        %642 = vmatprep.subr.mxu0 0.0
        %643 = vmatpush1.msra.mxu0 %v376
        %644 = vmatprep.subr.mxu0 0.0
        %645 = vmatpush1.msra.mxu0 0.0
        %646 = vmatprep.subr.mxu0 0.0
        %647 = vmatpush1.msra.mxu0 0.0
        %648 = vmatprep.subr.mxu0 0.0
        %649 = vmatpush1.msra.mxu0 0.0
        %650 = vmatprep.subr.mxu0 0.0
        %651 = vmatpush1.msra.mxu0 0.0
        %652 = vmatprep.subr.mxu0 0.0
        %653 = vmatpush1.msra.mxu0 0.0
        %654 = vmatprep.subr.mxu0 0.0
        %655 = vmatpush1.msra.mxu0 0.0
        %656 = vmatprep.subr.mxu0 0.0
        %657 = vmatpush1.msra.mxu0 0.0
        %658 = vmatprep.subr.mxu0 0.0
        %659 = vmatpush1.msra.mxu0 0.0
        %660 = vmatprep.subr.mxu0 0.0
        %661 = vmatpush1.msra.mxu0 0.0
        %662 = vmatprep.subr.mxu0 0.0
        %663 = vmatpush1.msra.mxu0 0.0
        %664 = vmatprep.subr.mxu0 0.0
        %665 = vmatpush1.msra.mxu0 0.0
        %666 = vmatprep.subr.mxu0 0.0
        %667 = vmatpush1.msra.mxu0 0.0
        %668 = vmatprep.subr.mxu0 0.0
        %669 = vmatpush1.msra.mxu0 0.0
        %670 = vmatprep.subr.mxu0 0.0
        %671 = vmatpush1.msra.mxu0 0.0
        %672 = vmatprep.subr.mxu0 0.0
        %673 = vmatpush1.msra.mxu0 0.0
        %674 = vmatprep.subr.mxu0 0.0
        %675 = vmatpush1.msra.mxu0 0.0
        %676 = vmatprep.subr.mxu0 0.0
        %677 = vmatpush1.msra.mxu0 0.0
        %678 = vmatprep.subr.mxu0 0.0
        %679 = vmatpush1.msra.mxu0 0.0
        %680 = vmatprep.subr.mxu0 0.0
        %681 = vmatpush1.msra.mxu0 0.0
        %682 = vmatprep.subr.mxu0 0.0
        %683 = vmatpush1.msra.mxu0 0.0
        %684 = vmatprep.subr.mxu0 0.0
        %685 = vmatpush1.msra.mxu0 0.0
        %686 = vmatprep.subr.mxu0 0.0
        %687 = vmatpush1.msra.mxu0 0.0
        %688 = vmatprep.subr.mxu0 0.0
        %689 = vmatpush1.msra.mxu0 0.0
        %690 = vmatprep.subr.mxu0 0.0
        %691 = vmatpush1.msra.mxu0 0.0
        %692 = vmatprep.subr.mxu0 0.0
        %693 = vmatpush1.msra.mxu0 0.0
        %694 = vmatprep.subr.mxu0 0.0
        %695 = vmatpush1.msra.mxu0 0.0
        %696 = vmatprep.subr.mxu0 0.0
        %697 = vmatpush1.msra.mxu0 0.0
        %698 = vmatprep.subr.mxu0 0.0
        %699 = vmatpush1.msra.mxu0 0.0
        %700 = vmatprep.subr.mxu0 0.0
        %701 = vmatpush1.msra.mxu0 0.0
        %702 = vmatprep.subr.mxu0 0.0
        %703 = vmatpush1.msra.mxu0 0.0
        %704 = vmatprep.subr.mxu0 0.0
        %705 = vmatpush1.msra.mxu0 0.0
        %706 = vmatprep.mubr.f32.mxu0 0.0
        %707 = vmatmul.mubr.f32.gmra.mrb[0].mxu0 %v619
        %v708 = vpop.f32.mrb[0].mxu0
        %v709 = vadd.f32 0.0, %v708
        %v710 = vpop.f32.mrb[0].mxu0
        %711 = vmatprep.mubr.f32.mxu0 0.0
        %712 = vmatmul.mubr.f32.gmra.mrb[0].mxu0 %v622
        %v713 = vpop.f32.mrb[0].mxu0
        %v714 = vadd.f32 0.0, %v713
        %v715 = vpop.f32.mrb[0].mxu0
        %716 = vmatprep.mubr.f32.mxu0 0.0
        %717 = vmatmul.mubr.f32.gmra.mrb[0].mxu0 %v625
        %v718 = vpop.f32.mrb[0].mxu0
        %v719 = vadd.f32 0.0, %v718
        %v720 = vpop.f32.mrb[0].mxu0
        %721 = vmatprep.mubr.f32.mxu0 0.0
        %722 = vmatmul.mubr.f32.gmra.mrb[0].mxu0 %v628
        %v723 = vpop.f32.mrb[0].mxu0
        %v724 = vadd.f32 0.0, %v723
        %v725 = vpop.f32.mrb[0].mxu0
        %726 = vmatprep.mubr.f32.mxu0 0.0
        %727 = vmatmul.mubr.f32.gmra.mrb[0].mxu0 %v631
        %v728 = vpop.f32.mrb[0].mxu0
        %v729 = vadd.f32 0.0, %v728
        %v730 = vpop.f32.mrb[0].mxu0
        %731 = vmatprep.mubr.f32.mxu0 0.0
        %732 = vmatmul.mubr.f32.gmra.mrb[0].mxu0 %v634
        %v733 = vpop.f32.mrb[0].mxu0
        %v734 = vadd.f32 0.0, %v733
        %v735 = vpop.f32.mrb[0].mxu0
        %736 = vmatprep.mubr.f32.mxu0 0.0
        %737 = vmatmul.mubr.f32.gmra.mrb[0].mxu0 %v637
        %v738 = vpop.f32.mrb[0].mxu0
        %v739 = vadd.f32 0.0, %v738
        %v740 = vpop.f32.mrb[0].mxu0
        %741 = vmatprep.mubr.f32.mxu0 0.0
        %742 = vmatmul.mubr.f32.gmra.mrb[0].mxu0 %v640
        %v743 = vpop.f32.mrb[0].mxu0
        %v744 = vadd.f32 0.0, %v743
        %v745 = vpop.f32.mrb[0].mxu0
        %746 = vdwg.mxu0
        %s747 = sld [smem:[#allocation4 + $0x1]]
        %v748 = vstv %s747
        %v749 = vadd.f32 %v709, %v748
        %v750 = vadd.f32 %v714, %v748
        %v751 = vadd.f32 %v719, %v748
        %v752 = vadd.f32 %v724, %v748
        %v753 = vadd.f32 %v729, %v748
        %v754 = vadd.f32 %v734, %v748
        %v755 = vadd.f32 %v739, %v748
        %v756 = vadd.f32 %v744, %v748
        %s757 = sld [smem:[#allocation2 + $0x1]]
        %v758 = vld [vmem:[%s325] sm:$0xff]
        %v759 = vld [vmem:[%s325 + $0x8] sm:$0xff]
        %v760 = vld [vmem:[%s325 + $0x10] sm:$0xff]
        %v761 = vld [vmem:[%s325 + $0x18] sm:$0xff]
        %v762 = vld [vmem:[%s325 + $0x20] sm:$0xff]
        %v763 = vld [vmem:[%s325 + $0x28] sm:$0xff]
        %v764 = vld [vmem:[%s325 + $0x30] sm:$0xff]
        %v765 = vld [vmem:[%s325 + $0x38] sm:$0xff]
        %v766 = vstv %s757
        %v767 = vmul.f32 %v766, %v758
        %v768 = vmul.f32 %v766, %v759
        %v769 = vmul.f32 %v766, %v760
        %v770 = vmul.f32 %v766, %v761
        %v771 = vmul.f32 %v766, %v762
        %v772 = vmul.f32 %v766, %v763
        %v773 = vmul.f32 %v766, %v764
        %v774 = vmul.f32 %v766, %v765
        %v775 = vadd.f32 %v749, %v767
        %v776 = vadd.f32 %v750, %v768
        %v777 = vadd.f32 %v751, %v769
        %v778 = vadd.f32 %v752, %v770
        %v779 = vadd.f32 %v753, %v771
        %v780 = vadd.f32 %v754, %v772
        %v781 = vadd.f32 %v755, %v773
        %v782 = vadd.f32 %v756, %v774
        %s783 = sld [smem:[#allocation2 + $0x81]]
        %v784 = vld [vmem:[%s520] sm:$0xff]
        %v785 = vld [vmem:[%s520 + $0x8] sm:$0xff]
        %v786 = vld [vmem:[%s520 + $0x10] sm:$0xff]
        %v787 = vld [vmem:[%s520 + $0x18] sm:$0xff]
        %v788 = vld [vmem:[%s520 + $0x20] sm:$0xff]
        %v789 = vld [vmem:[%s520 + $0x28] sm:$0xff]
        %v790 = vld [vmem:[%s520 + $0x30] sm:$0xff]
        %v791 = vld [vmem:[%s520 + $0x38] sm:$0xff]
        %v792 = vstv %s783
        %v793 = vmul.f32 %v792, %v784
        %v794 = vmul.f32 %v792, %v785
        %v795 = vmul.f32 %v792, %v786
        %v796 = vmul.f32 %v792, %v787
        %v797 = vmul.f32 %v792, %v788
        %v798 = vmul.f32 %v792, %v789
        %v799 = vmul.f32 %v792, %v790
        %v800 = vmul.f32 %v792, %v791
        %v801 = vadd.f32 %v775, %v793
        %v802 = vadd.f32 %v776, %v794
        %v803 = vadd.f32 %v777, %v795
        %v804 = vadd.f32 %v778, %v796
        %v805 = vadd.f32 %v779, %v797
        %v806 = vadd.f32 %v780, %v798
        %v807 = vadd.f32 %v781, %v799
        %v808 = vadd.f32 %v782, %v800
        %s809 = sld [smem:[#allocation2 + $0x101]]
        %v810 = vld [vmem:[%s547] sm:$0xff]
        %v811 = vld [vmem:[%s547 + $0x8] sm:$0xff]
        %v812 = vld [vmem:[%s547 + $0x10] sm:$0xff]
        %v813 = vld [vmem:[%s547 + $0x18] sm:$0xff]
        %v814 = vld [vmem:[%s547 + $0x20] sm:$0xff]
        %v815 = vld [vmem:[%s547 + $0x28] sm:$0xff]
        %v816 = vld [vmem:[%s547 + $0x30] sm:$0xff]
        %v817 = vld [vmem:[%s547 + $0x38] sm:$0xff]
        %v818 = vstv %s809
        %v819 = vmul.f32 %v818, %v810
        %v820 = vmul.f32 %v818, %v811
        %v821 = vmul.f32 %v818, %v812
        %v822 = vmul.f32 %v818, %v813
        %v823 = vmul.f32 %v818, %v814
        %v824 = vmul.f32 %v818, %v815
        %v825 = vmul.f32 %v818, %v816
        %v826 = vmul.f32 %v818, %v817
        %v827 = vadd.f32 %v801, %v819
        %v828 = vadd.f32 %v802, %v820
        %v829 = vadd.f32 %v803, %v821
        %v830 = vadd.f32 %v804, %v822
        %v831 = vadd.f32 %v805, %v823
        %v832 = vadd.f32 %v806, %v824
        %v833 = vadd.f32 %v807, %v825
        %v834 = vadd.f32 %v808, %v826
        %s835 = sld [smem:[#allocation2 + $0x181]]
        %v836 = vld [vmem:[%s574] sm:$0xff]
        %v837 = vld [vmem:[%s574 + $0x8] sm:$0xff]
        %v838 = vld [vmem:[%s574 + $0x10] sm:$0xff]
        %v839 = vld [vmem:[%s574 + $0x18] sm:$0xff]
        %v840 = vld [vmem:[%s574 + $0x20] sm:$0xff]
        %v841 = vld [vmem:[%s574 + $0x28] sm:$0xff]
        %v842 = vld [vmem:[%s574 + $0x30] sm:$0xff]
        %v843 = vld [vmem:[%s574 + $0x38] sm:$0xff]
        %v844 = vstv %s835
        %v845 = vmul.f32 %v844, %v836
        %v846 = vmul.f32 %v844, %v837
        %v847 = vmul.f32 %v844, %v838
        %v848 = vmul.f32 %v844, %v839
        %v849 = vmul.f32 %v844, %v840
        %v850 = vmul.f32 %v844, %v841
        %v851 = vmul.f32 %v844, %v842
        %v852 = vmul.f32 %v844, %v843
        %v853 = vadd.f32 %v827, %v845
        %v854 = vadd.f32 %v828, %v846
        %v855 = vadd.f32 %v829, %v847
        %v856 = vadd.f32 %v830, %v848
        %v857 = vadd.f32 %v831, %v849
        %v858 = vadd.f32 %v832, %v850
        %v859 = vadd.f32 %v833, %v851
        %v860 = vadd.f32 %v834, %v852
        %s861 = scalar_lea.vmem %s337, 64
        %862 = vst.msk [vmem:[%s861] sm:$0xff] %vm600, %v853
        %863 = vst.msk [vmem:[%s861 + $0x8] sm:$0xff] %vm600, %v854
        %864 = vst.msk [vmem:[%s861 + $0x10] sm:$0xff] %vm600, %v855
        %865 = vst.msk [vmem:[%s861 + $0x18] sm:$0xff] %vm600, %v856
        %866 = vst.msk [vmem:[%s861 + $0x20] sm:$0xff] %vm600, %v857
        %867 = vst.msk [vmem:[%s861 + $0x28] sm:$0xff] %vm600, %v858
        %868 = vst.msk [vmem:[%s861 + $0x30] sm:$0xff] %vm600, %v859
        %869 = vst.msk [vmem:[%s861 + $0x38] sm:$0xff] %vm600, %v860
        %s870 = scalar_lea.vmem %s313, 128
        %v871 = vld [vmem:[%s870] sm:$0xff]
        %v872 = vld [vmem:[%s870 + $0x8] sm:$0xff]
        %v873 = vld [vmem:[%s870 + $0x10] sm:$0xff]
        %v874 = vld [vmem:[%s870 + $0x18] sm:$0xff]
        %v875 = vld [vmem:[%s870 + $0x20] sm:$0xff]
        %v876 = vld [vmem:[%s870 + $0x28] sm:$0xff]
        %v877 = vld [vmem:[%s870 + $0x30] sm:$0xff]
        %v878 = vld [vmem:[%s870 + $0x38] sm:$0xff]
        %v880 = vsel %vm349, %v871, 0
        %v883 = vsel %vm349, %v872, 0
        %v886 = vsel %vm349, %v873, 0
        %v889 = vsel %vm349, %v874, 0
        %v892 = vsel %vm349, %v875, 0
        %v895 = vsel %vm349, %v876, 0
        %v898 = vsel %vm349, %v877, 0
        %v901 = vsel %vm349, %v878, 0
        %903 = vmatprep.subr.mxu0 0.0
        %904 = vmatpush1.msra.mxu0 %v376
        %905 = vmatprep.subr.mxu0 0.0
        %906 = vmatpush1.msra.mxu0 0.0
        %907 = vmatprep.subr.mxu0 0.0
        %908 = vmatpush1.msra.mxu0 0.0
        %909 = vmatprep.subr.mxu0 0.0
        %910 = vmatpush1.msra.mxu0 0.0
        %911 = vmatprep.subr.mxu0 0.0
        %912 = vmatpush1.msra.mxu0 0.0
        %913 = vmatprep.subr.mxu0 0.0
        %914 = vmatpush1.msra.mxu0 0.0
        %915 = vmatprep.subr.mxu0 0.0
        %916 = vmatpush1.msra.mxu0 0.0
        %917 = vmatprep.subr.mxu0 0.0
        %918 = vmatpush1.msra.mxu0 0.0
        %919 = vmatprep.subr.mxu0 0.0
        %920 = vmatpush1.msra.mxu0 0.0
        %921 = vmatprep.subr.mxu0 0.0
        %922 = vmatpush1.msra.mxu0 0.0
        %923 = vmatprep.subr.mxu0 0.0
        %924 = vmatpush1.msra.mxu0 0.0
        %925 = vmatprep.subr.mxu0 0.0
        %926 = vmatpush1.msra.mxu0 0.0
        %927 = vmatprep.subr.mxu0 0.0
        %928 = vmatpush1.msra.mxu0 0.0
        %929 = vmatprep.subr.mxu0 0.0
        %930 = vmatpush1.msra.mxu0 0.0
        %931 = vmatprep.subr.mxu0 0.0
        %932 = vmatpush1.msra.mxu0 0.0
        %933 = vmatprep.subr.mxu0 0.0
        %934 = vmatpush1.msra.mxu0 0.0
        %935 = vmatprep.subr.mxu0 0.0
        %936 = vmatpush1.msra.mxu0 0.0
        %937 = vmatprep.subr.mxu0 0.0
        %938 = vmatpush1.msra.mxu0 0.0
        %939 = vmatprep.subr.mxu0 0.0
        %940 = vmatpush1.msra.mxu0 0.0
        %941 = vmatprep.subr.mxu0 0.0
        %942 = vmatpush1.msra.mxu0 0.0
        %943 = vmatprep.subr.mxu0 0.0
        %944 = vmatpush1.msra.mxu0 0.0
        %945 = vmatprep.subr.mxu0 0.0
        %946 = vmatpush1.msra.mxu0 0.0
        %947 = vmatprep.subr.mxu0 0.0
        %948 = vmatpush1.msra.mxu0 0.0
        %949 = vmatprep.subr.mxu0 0.0
        %950 = vmatpush1.msra.mxu0 0.0
        %951 = vmatprep.subr.mxu0 0.0
        %952 = vmatpush1.msra.mxu0 0.0
        %953 = vmatprep.subr.mxu0 0.0
        %954 = vmatpush1.msra.mxu0 0.0
        %955 = vmatprep.subr.mxu0 0.0
        %956 = vmatpush1.msra.mxu0 0.0
        %957 = vmatprep.subr.mxu0 0.0
        %958 = vmatpush1.msra.mxu0 0.0
        %959 = vmatprep.subr.mxu0 0.0
        %960 = vmatpush1.msra.mxu0 0.0
        %961 = vmatprep.subr.mxu0 0.0
        %962 = vmatpush1.msra.mxu0 0.0
        %963 = vmatprep.subr.mxu0 0.0
        %964 = vmatpush1.msra.mxu0 0.0
        %965 = vmatprep.subr.mxu0 0.0
        %966 = vmatpush1.msra.mxu0 0.0
        %967 = vmatprep.mubr.f32.mxu0 0.0
        %968 = vmatmul.mubr.f32.gmra.mrb[0].mxu0 %v880
        %v969 = vpop.f32.mrb[0].mxu0
        %v970 = vadd.f32 0.0, %v969
        %v971 = vpop.f32.mrb[0].mxu0
        %972 = vmatprep.mubr.f32.mxu0 0.0
        %973 = vmatmul.mubr.f32.gmra.mrb[0].mxu0 %v883
        %v974 = vpop.f32.mrb[0].mxu0
        %v975 = vadd.f32 0.0, %v974
        %v976 = vpop.f32.mrb[0].mxu0
        %977 = vmatprep.mubr.f32.mxu0 0.0
        %978 = vmatmul.mubr.f32.gmra.mrb[0].mxu0 %v886
        %v979 = vpop.f32.mrb[0].mxu0
        %v980 = vadd.f32 0.0, %v979
        %v981 = vpop.f32.mrb[0].mxu0
        %982 = vmatprep.mubr.f32.mxu0 0.0
        %983 = vmatmul.mubr.f32.gmra.mrb[0].mxu0 %v889
        %v984 = vpop.f32.mrb[0].mxu0
        %v985 = vadd.f32 0.0, %v984
        %v986 = vpop.f32.mrb[0].mxu0
        %987 = vmatprep.mubr.f32.mxu0 0.0
        %988 = vmatmul.mubr.f32.gmra.mrb[0].mxu0 %v892
        %v989 = vpop.f32.mrb[0].mxu0
        %v990 = vadd.f32 0.0, %v989
        %v991 = vpop.f32.mrb[0].mxu0
        %992 = vmatprep.mubr.f32.mxu0 0.0
        %993 = vmatmul.mubr.f32.gmra.mrb[0].mxu0 %v895
        %v994 = vpop.f32.mrb[0].mxu0
        %v995 = vadd.f32 0.0, %v994
        %v996 = vpop.f32.mrb[0].mxu0
        %997 = vmatprep.mubr.f32.mxu0 0.0
        %998 = vmatmul.mubr.f32.gmra.mrb[0].mxu0 %v898
        %v999 = vpop.f32.mrb[0].mxu0
        %v1000 = vadd.f32 0.0, %v999
        %v1001 = vpop.f32.mrb[0].mxu0
        %1002 = vmatprep.mubr.f32.mxu0 0.0
        %1003 = vmatmul.mubr.f32.gmra.mrb[0].mxu0 %v901
        %v1004 = vpop.f32.mrb[0].mxu0
        %v1005 = vadd.f32 0.0, %v1004
        %v1006 = vpop.f32.mrb[0].mxu0
        %1007 = vdwg.mxu0
        %s1008 = sld [smem:[#allocation4 + $0x2]]
        %v1009 = vstv %s1008
        %v1010 = vadd.f32 %v970, %v1009
        %v1011 = vadd.f32 %v975, %v1009
        %v1012 = vadd.f32 %v980, %v1009
        %v1013 = vadd.f32 %v985, %v1009
        %v1014 = vadd.f32 %v990, %v1009
        %v1015 = vadd.f32 %v995, %v1009
        %v1016 = vadd.f32 %v1000, %v1009
        %v1017 = vadd.f32 %v1005, %v1009
        %s1018 = sld [smem:[#allocation2 + $0x2]]
        %v1019 = vld [vmem:[%s325] sm:$0xff]
        %v1020 = vld [vmem:[%s325 + $0x8] sm:$0xff]
        %v1021 = vld [vmem:[%s325 + $0x10] sm:$0xff]
        %v1022 = vld [vmem:[%s325 + $0x18] sm:$0xff]
        %v1023 = vld [vmem:[%s325 + $0x20] sm:$0xff]
        %v1024 = vld [vmem:[%s325 + $0x28] sm:$0xff]
        %v1025 = vld [vmem:[%s325 + $0x30] sm:$0xff]
        %v1026 = vld [vmem:[%s325 + $0x38] sm:$0xff]
        %v1027 = vstv %s1018
        %v1028 = vmul.f32 %v1027, %v1019
        %v1029 = vmul.f32 %v1027, %v1020
        %v1030 = vmul.f32 %v1027, %v1021
        %v1031 = vmul.f32 %v1027, %v1022
        %v1032 = vmul.f32 %v1027, %v1023
        %v1033 = vmul.f32 %v1027, %v1024
        %v1034 = vmul.f32 %v1027, %v1025
        %v1035 = vmul.f32 %v1027, %v1026
        %v1036 = vadd.f32 %v1010, %v1028
        %v1037 = vadd.f32 %v1011, %v1029
        %v1038 = vadd.f32 %v1012, %v1030
        %v1039 = vadd.f32 %v1013, %v1031
        %v1040 = vadd.f32 %v1014, %v1032
        %v1041 = vadd.f32 %v1015, %v1033
        %v1042 = vadd.f32 %v1016, %v1034
        %v1043 = vadd.f32 %v1017, %v1035
        %s1044 = sld [smem:[#allocation2 + $0x82]]
        %v1045 = vld [vmem:[%s520] sm:$0xff]
        %v1046 = vld [vmem:[%s520 + $0x8] sm:$0xff]
        %v1047 = vld [vmem:[%s520 + $0x10] sm:$0xff]
        %v1048 = vld [vmem:[%s520 + $0x18] sm:$0xff]
        %v1049 = vld [vmem:[%s520 + $0x20] sm:$0xff]
        %v1050 = vld [vmem:[%s520 + $0x28] sm:$0xff]
        %v1051 = vld [vmem:[%s520 + $0x30] sm:$0xff]
        %v1052 = vld [vmem:[%s520 + $0x38] sm:$0xff]
        %v1053 = vstv %s1044
        %v1054 = vmul.f32 %v1053, %v1045
        %v1055 = vmul.f32 %v1053, %v1046
        %v1056 = vmul.f32 %v1053, %v1047
        %v1057 = vmul.f32 %v1053, %v1048
        %v1058 = vmul.f32 %v1053, %v1049
        %v1059 = vmul.f32 %v1053, %v1050
        %v1060 = vmul.f32 %v1053, %v1051
        %v1061 = vmul.f32 %v1053, %v1052
        %v1062 = vadd.f32 %v1036, %v1054
        %v1063 = vadd.f32 %v1037, %v1055
        %v1064 = vadd.f32 %v1038, %v1056
        %v1065 = vadd.f32 %v1039, %v1057
        %v1066 = vadd.f32 %v1040, %v1058
        %v1067 = vadd.f32 %v1041, %v1059
        %v1068 = vadd.f32 %v1042, %v1060
        %v1069 = vadd.f32 %v1043, %v1061
        %s1070 = sld [smem:[#allocation2 + $0x102]]
        %v1071 = vld [vmem:[%s547] sm:$0xff]
        %v1072 = vld [vmem:[%s547 + $0x8] sm:$0xff]
        %v1073 = vld [vmem:[%s547 + $0x10] sm:$0xff]
        %v1074 = vld [vmem:[%s547 + $0x18] sm:$0xff]
        %v1075 = vld [vmem:[%s547 + $0x20] sm:$0xff]
        %v1076 = vld [vmem:[%s547 + $0x28] sm:$0xff]
        %v1077 = vld [vmem:[%s547 + $0x30] sm:$0xff]
        %v1078 = vld [vmem:[%s547 + $0x38] sm:$0xff]
        %v1079 = vstv %s1070
        %v1080 = vmul.f32 %v1079, %v1071
        %v1081 = vmul.f32 %v1079, %v1072
        %v1082 = vmul.f32 %v1079, %v1073
        %v1083 = vmul.f32 %v1079, %v1074
        %v1084 = vmul.f32 %v1079, %v1075
        %v1085 = vmul.f32 %v1079, %v1076
        %v1086 = vmul.f32 %v1079, %v1077
        %v1087 = vmul.f32 %v1079, %v1078
        %v1088 = vadd.f32 %v1062, %v1080
        %v1089 = vadd.f32 %v1063, %v1081
        %v1090 = vadd.f32 %v1064, %v1082
        %v1091 = vadd.f32 %v1065, %v1083
        %v1092 = vadd.f32 %v1066, %v1084
        %v1093 = vadd.f32 %v1067, %v1085
        %v1094 = vadd.f32 %v1068, %v1086
        %v1095 = vadd.f32 %v1069, %v1087
        %s1096 = sld [smem:[#allocation2 + $0x182]]
        %v1097 = vld [vmem:[%s574] sm:$0xff]
        %v1098 = vld [vmem:[%s574 + $0x8] sm:$0xff]
        %v1099 = vld [vmem:[%s574 + $0x10] sm:$0xff]
        %v1100 = vld [vmem:[%s574 + $0x18] sm:$0xff]
        %v1101 = vld [vmem:[%s574 + $0x20] sm:$0xff]
        %v1102 = vld [vmem:[%s574 + $0x28] sm:$0xff]
        %v1103 = vld [vmem:[%s574 + $0x30] sm:$0xff]
        %v1104 = vld [vmem:[%s574 + $0x38] sm:$0xff]
        %v1105 = vstv %s1096
        %v1106 = vmul.f32 %v1105, %v1097
        %v1107 = vmul.f32 %v1105, %v1098
        %v1108 = vmul.f32 %v1105, %v1099
        %v1109 = vmul.f32 %v1105, %v1100
        %v1110 = vmul.f32 %v1105, %v1101
        %v1111 = vmul.f32 %v1105, %v1102
        %v1112 = vmul.f32 %v1105, %v1103
        %v1113 = vmul.f32 %v1105, %v1104
        %v1114 = vadd.f32 %v1088, %v1106
        %v1115 = vadd.f32 %v1089, %v1107
        %v1116 = vadd.f32 %v1090, %v1108
        %v1117 = vadd.f32 %v1091, %v1109
        %v1118 = vadd.f32 %v1092, %v1110
        %v1119 = vadd.f32 %v1093, %v1111
        %v1120 = vadd.f32 %v1094, %v1112
        %v1121 = vadd.f32 %v1095, %v1113
        %s1122 = scalar_lea.vmem %s337, 128
        %1123 = vst.msk [vmem:[%s1122] sm:$0xff] %vm600, %v1114
        %1124 = vst.msk [vmem:[%s1122 + $0x8] sm:$0xff] %vm600, %v1115
        %1125 = vst.msk [vmem:[%s1122 + $0x10] sm:$0xff] %vm600, %v1116
        %1126 = vst.msk [vmem:[%s1122 + $0x18] sm:$0xff] %vm600, %v1117
        %1127 = vst.msk [vmem:[%s1122 + $0x20] sm:$0xff] %vm600, %v1118
        %1128 = vst.msk [vmem:[%s1122 + $0x28] sm:$0xff] %vm600, %v1119
        %1129 = vst.msk [vmem:[%s1122 + $0x30] sm:$0xff] %vm600, %v1120
        %1130 = vst.msk [vmem:[%s1122 + $0x38] sm:$0xff] %vm600, %v1121
        %s1131 = scalar_lea.vmem %s313, 192
        %v1132 = vld [vmem:[%s1131] sm:$0xff]
        %v1133 = vld [vmem:[%s1131 + $0x8] sm:$0xff]
        %v1134 = vld [vmem:[%s1131 + $0x10] sm:$0xff]
        %v1135 = vld [vmem:[%s1131 + $0x18] sm:$0xff]
        %v1136 = vld [vmem:[%s1131 + $0x20] sm:$0xff]
        %v1137 = vld [vmem:[%s1131 + $0x28] sm:$0xff]
        %v1138 = vld [vmem:[%s1131 + $0x30] sm:$0xff]
        %v1139 = vld [vmem:[%s1131 + $0x38] sm:$0xff]
        %v1141 = vsel %vm349, %v1132, 0
        %v1144 = vsel %vm349, %v1133, 0
        %v1147 = vsel %vm349, %v1134, 0
        %v1150 = vsel %vm349, %v1135, 0
        %v1153 = vsel %vm349, %v1136, 0
        %v1156 = vsel %vm349, %v1137, 0
        %v1159 = vsel %vm349, %v1138, 0
        %v1162 = vsel %vm349, %v1139, 0
        %1164 = vmatprep.subr.mxu0 0.0
        %1165 = vmatpush1.msra.mxu0 %v376
        %1166 = vmatprep.subr.mxu0 0.0
        %1167 = vmatpush1.msra.mxu0 0.0
        %1168 = vmatprep.subr.mxu0 0.0
        %1169 = vmatpush1.msra.mxu0 0.0
        %1170 = vmatprep.subr.mxu0 0.0
        %1171 = vmatpush1.msra.mxu0 0.0
        %1172 = vmatprep.subr.mxu0 0.0
        %1173 = vmatpush1.msra.mxu0 0.0
        %1174 = vmatprep.subr.mxu0 0.0
        %1175 = vmatpush1.msra.mxu0 0.0
        %1176 = vmatprep.subr.mxu0 0.0
        %1177 = vmatpush1.msra.mxu0 0.0
        %1178 = vmatprep.subr.mxu0 0.0
        %1179 = vmatpush1.msra.mxu0 0.0
        %1180 = vmatprep.subr.mxu0 0.0
        %1181 = vmatpush1.msra.mxu0 0.0
        %1182 = vmatprep.subr.mxu0 0.0
        %1183 = vmatpush1.msra.mxu0 0.0
        %1184 = vmatprep.subr.mxu0 0.0
        %1185 = vmatpush1.msra.mxu0 0.0
        %1186 = vmatprep.subr.mxu0 0.0
        %1187 = vmatpush1.msra.mxu0 0.0
        %1188 = vmatprep.subr.mxu0 0.0
        %1189 = vmatpush1.msra.mxu0 0.0
        %1190 = vmatprep.subr.mxu0 0.0
        %1191 = vmatpush1.msra.mxu0 0.0
        %1192 = vmatprep.subr.mxu0 0.0
        %1193 = vmatpush1.msra.mxu0 0.0
        %1194 = vmatprep.subr.mxu0 0.0
        %1195 = vmatpush1.msra.mxu0 0.0
        %1196 = vmatprep.subr.mxu0 0.0
        %1197 = vmatpush1.msra.mxu0 0.0
        %1198 = vmatprep.subr.mxu0 0.0
        %1199 = vmatpush1.msra.mxu0 0.0
        %1200 = vmatprep.subr.mxu0 0.0
        %1201 = vmatpush1.msra.mxu0 0.0
        %1202 = vmatprep.subr.mxu0 0.0
        %1203 = vmatpush1.msra.mxu0 0.0
        %1204 = vmatprep.subr.mxu0 0.0
        %1205 = vmatpush1.msra.mxu0 0.0
        %1206 = vmatprep.subr.mxu0 0.0
        %1207 = vmatpush1.msra.mxu0 0.0
        %1208 = vmatprep.subr.mxu0 0.0
        %1209 = vmatpush1.msra.mxu0 0.0
        %1210 = vmatprep.subr.mxu0 0.0
        %1211 = vmatpush1.msra.mxu0 0.0
        %1212 = vmatprep.subr.mxu0 0.0
        %1213 = vmatpush1.msra.mxu0 0.0
        %1214 = vmatprep.subr.mxu0 0.0
        %1215 = vmatpush1.msra.mxu0 0.0
        %1216 = vmatprep.subr.mxu0 0.0
        %1217 = vmatpush1.msra.mxu0 0.0
        %1218 = vmatprep.subr.mxu0 0.0
        %1219 = vmatpush1.msra.mxu0 0.0
        %1220 = vmatprep.subr.mxu0 0.0
        %1221 = vmatpush1.msra.mxu0 0.0
        %1222 = vmatprep.subr.mxu0 0.0
        %1223 = vmatpush1.msra.mxu0 0.0
        %1224 = vmatprep.subr.mxu0 0.0
        %1225 = vmatpush1.msra.mxu0 0.0
        %1226 = vmatprep.subr.mxu0 0.0
        %1227 = vmatpush1.msra.mxu0 0.0
        %1228 = vmatprep.mubr.f32.mxu0 0.0
        %1229 = vmatmul.mubr.f32.gmra.mrb[0].mxu0 %v1141
        %v1230 = vpop.f32.mrb[0].mxu0
        %v1231 = vadd.f32 0.0, %v1230
        %v1232 = vpop.f32.mrb[0].mxu0
        %1233 = vmatprep.mubr.f32.mxu0 0.0
        %1234 = vmatmul.mubr.f32.gmra.mrb[0].mxu0 %v1144
        %v1235 = vpop.f32.mrb[0].mxu0
        %v1236 = vadd.f32 0.0, %v1235
        %v1237 = vpop.f32.mrb[0].mxu0
        %1238 = vmatprep.mubr.f32.mxu0 0.0
        %1239 = vmatmul.mubr.f32.gmra.mrb[0].mxu0 %v1147
        %v1240 = vpop.f32.mrb[0].mxu0
        %v1241 = vadd.f32 0.0, %v1240
        %v1242 = vpop.f32.mrb[0].mxu0
        %1243 = vmatprep.mubr.f32.mxu0 0.0
        %1244 = vmatmul.mubr.f32.gmra.mrb[0].mxu0 %v1150
        %v1245 = vpop.f32.mrb[0].mxu0
        %v1246 = vadd.f32 0.0, %v1245
        %v1247 = vpop.f32.mrb[0].mxu0
        %1248 = vmatprep.mubr.f32.mxu0 0.0
        %1249 = vmatmul.mubr.f32.gmra.mrb[0].mxu0 %v1153
        %v1250 = vpop.f32.mrb[0].mxu0
        %v1251 = vadd.f32 0.0, %v1250
        %v1252 = vpop.f32.mrb[0].mxu0
        %1253 = vmatprep.mubr.f32.mxu0 0.0
        %1254 = vmatmul.mubr.f32.gmra.mrb[0].mxu0 %v1156
        %v1255 = vpop.f32.mrb[0].mxu0
        %v1256 = vadd.f32 0.0, %v1255
        %v1257 = vpop.f32.mrb[0].mxu0
        %1258 = vmatprep.mubr.f32.mxu0 0.0
        %1259 = vmatmul.mubr.f32.gmra.mrb[0].mxu0 %v1159
        %v1260 = vpop.f32.mrb[0].mxu0
        %v1261 = vadd.f32 0.0, %v1260
        %v1262 = vpop.f32.mrb[0].mxu0
        %1263 = vmatprep.mubr.f32.mxu0 0.0
        %1264 = vmatmul.mubr.f32.gmra.mrb[0].mxu0 %v1162
        %v1265 = vpop.f32.mrb[0].mxu0
        %v1266 = vadd.f32 0.0, %v1265
        %v1267 = vpop.f32.mrb[0].mxu0
        %1268 = vdwg.mxu0
        %s1269 = sld [smem:[#allocation4 + $0x3]]
        %v1270 = vstv %s1269
        %v1271 = vadd.f32 %v1231, %v1270
        %v1272 = vadd.f32 %v1236, %v1270
        %v1273 = vadd.f32 %v1241, %v1270
        %v1274 = vadd.f32 %v1246, %v1270
        %v1275 = vadd.f32 %v1251, %v1270
        %v1276 = vadd.f32 %v1256, %v1270
        %v1277 = vadd.f32 %v1261, %v1270
        %v1278 = vadd.f32 %v1266, %v1270
        %s1279 = sld [smem:[#allocation2 + $0x3]]
        %v1280 = vld [vmem:[%s325] sm:$0xff]
        %v1281 = vld [vmem:[%s325 + $0x8] sm:$0xff]
        %v1282 = vld [vmem:[%s325 + $0x10] sm:$0xff]
        %v1283 = vld [vmem:[%s325 + $0x18] sm:$0xff]
        %v1284 = vld [vmem:[%s325 + $0x20] sm:$0xff]
        %v1285 = vld [vmem:[%s325 + $0x28] sm:$0xff]
        %v1286 = vld [vmem:[%s325 + $0x30] sm:$0xff]
        %v1287 = vld [vmem:[%s325 + $0x38] sm:$0xff]
        %v1288 = vstv %s1279
        %v1289 = vmul.f32 %v1288, %v1280
        %v1290 = vmul.f32 %v1288, %v1281
        %v1291 = vmul.f32 %v1288, %v1282
        %v1292 = vmul.f32 %v1288, %v1283
        %v1293 = vmul.f32 %v1288, %v1284
        %v1294 = vmul.f32 %v1288, %v1285
        %v1295 = vmul.f32 %v1288, %v1286
        %v1296 = vmul.f32 %v1288, %v1287
        %v1297 = vadd.f32 %v1271, %v1289
        %v1298 = vadd.f32 %v1272, %v1290
        %v1299 = vadd.f32 %v1273, %v1291
        %v1300 = vadd.f32 %v1274, %v1292
        %v1301 = vadd.f32 %v1275, %v1293
        %v1302 = vadd.f32 %v1276, %v1294
        %v1303 = vadd.f32 %v1277, %v1295
        %v1304 = vadd.f32 %v1278, %v1296
        %s1305 = sld [smem:[#allocation2 + $0x83]]
        %v1306 = vld [vmem:[%s520] sm:$0xff]
        %v1307 = vld [vmem:[%s520 + $0x8] sm:$0xff]
        %v1308 = vld [vmem:[%s520 + $0x10] sm:$0xff]
        %v1309 = vld [vmem:[%s520 + $0x18] sm:$0xff]
        %v1310 = vld [vmem:[%s520 + $0x20] sm:$0xff]
        %v1311 = vld [vmem:[%s520 + $0x28] sm:$0xff]
        %v1312 = vld [vmem:[%s520 + $0x30] sm:$0xff]
        %v1313 = vld [vmem:[%s520 + $0x38] sm:$0xff]
        %v1314 = vstv %s1305
        %v1315 = vmul.f32 %v1314, %v1306
        %v1316 = vmul.f32 %v1314, %v1307
        %v1317 = vmul.f32 %v1314, %v1308
        %v1318 = vmul.f32 %v1314, %v1309
        %v1319 = vmul.f32 %v1314, %v1310
        %v1320 = vmul.f32 %v1314, %v1311
        %v1321 = vmul.f32 %v1314, %v1312
        %v1322 = vmul.f32 %v1314, %v1313
        %v1323 = vadd.f32 %v1297, %v1315
        %v1324 = vadd.f32 %v1298, %v1316
        %v1325 = vadd.f32 %v1299, %v1317
        %v1326 = vadd.f32 %v1300, %v1318
        %v1327 = vadd.f32 %v1301, %v1319
        %v1328 = vadd.f32 %v1302, %v1320
        %v1329 = vadd.f32 %v1303, %v1321
        %v1330 = vadd.f32 %v1304, %v1322
        %s1331 = sld [smem:[#allocation2 + $0x103]]
        %v1332 = vld [vmem:[%s547] sm:$0xff]
        %v1333 = vld [vmem:[%s547 + $0x8] sm:$0xff]
        %v1334 = vld [vmem:[%s547 + $0x10] sm:$0xff]
        %v1335 = vld [vmem:[%s547 + $0x18] sm:$0xff]
        %v1336 = vld [vmem:[%s547 + $0x20] sm:$0xff]
        %v1337 = vld [vmem:[%s547 + $0x28] sm:$0xff]
        %v1338 = vld [vmem:[%s547 + $0x30] sm:$0xff]
        %v1339 = vld [vmem:[%s547 + $0x38] sm:$0xff]
        %v1340 = vstv %s1331
        %v1341 = vmul.f32 %v1340, %v1332
        %v1342 = vmul.f32 %v1340, %v1333
        %v1343 = vmul.f32 %v1340, %v1334
        %v1344 = vmul.f32 %v1340, %v1335
        %v1345 = vmul.f32 %v1340, %v1336
        %v1346 = vmul.f32 %v1340, %v1337
        %v1347 = vmul.f32 %v1340, %v1338
        %v1348 = vmul.f32 %v1340, %v1339
        %v1349 = vadd.f32 %v1323, %v1341
        %v1350 = vadd.f32 %v1324, %v1342
        %v1351 = vadd.f32 %v1325, %v1343
        %v1352 = vadd.f32 %v1326, %v1344
        %v1353 = vadd.f32 %v1327, %v1345
        %v1354 = vadd.f32 %v1328, %v1346
        %v1355 = vadd.f32 %v1329, %v1347
        %v1356 = vadd.f32 %v1330, %v1348
        %s1357 = sld [smem:[#allocation2 + $0x183]]
        %v1358 = vld [vmem:[%s574] sm:$0xff]
        %v1359 = vld [vmem:[%s574 + $0x8] sm:$0xff]
        %v1360 = vld [vmem:[%s574 + $0x10] sm:$0xff]
        %v1361 = vld [vmem:[%s574 + $0x18] sm:$0xff]
        %v1362 = vld [vmem:[%s574 + $0x20] sm:$0xff]
        %v1363 = vld [vmem:[%s574 + $0x28] sm:$0xff]
        %v1364 = vld [vmem:[%s574 + $0x30] sm:$0xff]
        %v1365 = vld [vmem:[%s574 + $0x38] sm:$0xff]
        %v1366 = vstv %s1357
        %v1367 = vmul.f32 %v1366, %v1358
        %v1368 = vmul.f32 %v1366, %v1359
        %v1369 = vmul.f32 %v1366, %v1360
        %v1370 = vmul.f32 %v1366, %v1361
        %v1371 = vmul.f32 %v1366, %v1362
        %v1372 = vmul.f32 %v1366, %v1363
        %v1373 = vmul.f32 %v1366, %v1364
        %v1374 = vmul.f32 %v1366, %v1365
        %v1375 = vadd.f32 %v1349, %v1367
        %v1376 = vadd.f32 %v1350, %v1368
        %v1377 = vadd.f32 %v1351, %v1369
        %v1378 = vadd.f32 %v1352, %v1370
        %v1379 = vadd.f32 %v1353, %v1371
        %v1380 = vadd.f32 %v1354, %v1372
        %v1381 = vadd.f32 %v1355, %v1373
        %v1382 = vadd.f32 %v1356, %v1374
        %s1383 = scalar_lea.vmem %s337, 192
        %1384 = vst.msk [vmem:[%s1383] sm:$0xff] %vm600, %v1375
        %1385 = vst.msk [vmem:[%s1383 + $0x8] sm:$0xff] %vm600, %v1376
        %1386 = vst.msk [vmem:[%s1383 + $0x10] sm:$0xff] %vm600, %v1377
        %1387 = vst.msk [vmem:[%s1383 + $0x18] sm:$0xff] %vm600, %v1378
        %1388 = vst.msk [vmem:[%s1383 + $0x20] sm:$0xff] %vm600, %v1379
        %1389 = vst.msk [vmem:[%s1383 + $0x28] sm:$0xff] %vm600, %v1380
        %1390 = vst.msk [vmem:[%s1383 + $0x30] sm:$0xff] %vm600, %v1381
        %1391 = vst.msk [vmem:[%s1383 + $0x38] sm:$0xff] %vm600, %v1382
        %s1392 = scalar_lea.vmem %s313, 256
        %v1393 = vld [vmem:[%s1392] sm:$0xff]
        %v1394 = vld [vmem:[%s1392 + $0x8] sm:$0xff]
        %v1395 = vld [vmem:[%s1392 + $0x10] sm:$0xff]
        %v1396 = vld [vmem:[%s1392 + $0x18] sm:$0xff]
        %v1397 = vld [vmem:[%s1392 + $0x20] sm:$0xff]
        %v1398 = vld [vmem:[%s1392 + $0x28] sm:$0xff]
        %v1399 = vld [vmem:[%s1392 + $0x30] sm:$0xff]
        %v1400 = vld [vmem:[%s1392 + $0x38] sm:$0xff]
        %v1402 = vsel %vm349, %v1393, 0
        %v1405 = vsel %vm349, %v1394, 0
        %v1408 = vsel %vm349, %v1395, 0
        %v1411 = vsel %vm349, %v1396, 0
        %v1414 = vsel %vm349, %v1397, 0
        %v1417 = vsel %vm349, %v1398, 0
        %v1420 = vsel %vm349, %v1399, 0
        %v1423 = vsel %vm349, %v1400, 0
        %1425 = vmatprep.subr.mxu0 0.0
        %1426 = vmatpush1.msra.mxu0 %v376
        %1427 = vmatprep.subr.mxu0 0.0
        %1428 = vmatpush1.msra.mxu0 0.0
        %1429 = vmatprep.subr.mxu0 0.0
        %1430 = vmatpush1.msra.mxu0 0.0
        %1431 = vmatprep.subr.mxu0 0.0
        %1432 = vmatpush1.msra.mxu0 0.0
        %1433 = vmatprep.subr.mxu0 0.0
        %1434 = vmatpush1.msra.mxu0 0.0
        %1435 = vmatprep.subr.mxu0 0.0
        %1436 = vmatpush1.msra.mxu0 0.0
        %1437 = vmatprep.subr.mxu0 0.0
        %1438 = vmatpush1.msra.mxu0 0.0
        %1439 = vmatprep.subr.mxu0 0.0
        %1440 = vmatpush1.msra.mxu0 0.0
        %1441 = vmatprep.subr.mxu0 0.0
        %1442 = vmatpush1.msra.mxu0 0.0
        %1443 = vmatprep.subr.mxu0 0.0
        %1444 = vmatpush1.msra.mxu0 0.0
        %1445 = vmatprep.subr.mxu0 0.0
        %1446 = vmatpush1.msra.mxu0 0.0
        %1447 = vmatprep.subr.mxu0 0.0
        %1448 = vmatpush1.msra.mxu0 0.0
        %1449 = vmatprep.subr.mxu0 0.0
        %1450 = vmatpush1.msra.mxu0 0.0
        %1451 = vmatprep.subr.mxu0 0.0
        %1452 = vmatpush1.msra.mxu0 0.0
        %1453 = vmatprep.subr.mxu0 0.0
        %1454 = vmatpush1.msra.mxu0 0.0
        %1455 = vmatprep.subr.mxu0 0.0
        %1456 = vmatpush1.msra.mxu0 0.0
        %1457 = vmatprep.subr.mxu0 0.0
        %1458 = vmatpush1.msra.mxu0 0.0
        %1459 = vmatprep.subr.mxu0 0.0
        %1460 = vmatpush1.msra.mxu0 0.0
        %1461 = vmatprep.subr.mxu0 0.0
        %1462 = vmatpush1.msra.mxu0 0.0
        %1463 = vmatprep.subr.mxu0 0.0
        %1464 = vmatpush1.msra.mxu0 0.0
        %1465 = vmatprep.subr.mxu0 0.0
        %1466 = vmatpush1.msra.mxu0 0.0
        %1467 = vmatprep.subr.mxu0 0.0
        %1468 = vmatpush1.msra.mxu0 0.0
        %1469 = vmatprep.subr.mxu0 0.0
        %1470 = vmatpush1.msra.mxu0 0.0
        %1471 = vmatprep.subr.mxu0 0.0
        %1472 = vmatpush1.msra.mxu0 0.0
        %1473 = vmatprep.subr.mxu0 0.0
        %1474 = vmatpush1.msra.mxu0 0.0
        %1475 = vmatprep.subr.mxu0 0.0
        %1476 = vmatpush1.msra.mxu0 0.0
        %1477 = vmatprep.subr.mxu0 0.0
        %1478 = vmatpush1.msra.mxu0 0.0
        %1479 = vmatprep.subr.mxu0 0.0
        %1480 = vmatpush1.msra.mxu0 0.0
        %1481 = vmatprep.subr.mxu0 0.0
        %1482 = vmatpush1.msra.mxu0 0.0
        %1483 = vmatprep.subr.mxu0 0.0
        %1484 = vmatpush1.msra.mxu0 0.0
        %1485 = vmatprep.subr.mxu0 0.0
        %1486 = vmatpush1.msra.mxu0 0.0
        %1487 = vmatprep.subr.mxu0 0.0
        %1488 = vmatpush1.msra.mxu0 0.0
        %1489 = vmatprep.mubr.f32.mxu0 0.0
        %1490 = vmatmul.mubr.f32.gmra.mrb[0].mxu0 %v1402
        %v1491 = vpop.f32.mrb[0].mxu0
        %v1492 = vadd.f32 0.0, %v1491
        %v1493 = vpop.f32.mrb[0].mxu0
        %1494 = vmatprep.mubr.f32.mxu0 0.0
        %1495 = vmatmul.mubr.f32.gmra.mrb[0].mxu0 %v1405
        %v1496 = vpop.f32.mrb[0].mxu0
        %v1497 = vadd.f32 0.0, %v1496
        %v1498 = vpop.f32.mrb[0].mxu0
        %1499 = vmatprep.mubr.f32.mxu0 0.0
        %1500 = vmatmul.mubr.f32.gmra.mrb[0].mxu0 %v1408
        %v1501 = vpop.f32.mrb[0].mxu0
        %v1502 = vadd.f32 0.0, %v1501
        %v1503 = vpop.f32.mrb[0].mxu0
        %1504 = vmatprep.mubr.f32.mxu0 0.0
        %1505 = vmatmul.mubr.f32.gmra.mrb[0].mxu0 %v1411
        %v1506 = vpop.f32.mrb[0].mxu0
        %v1507 = vadd.f32 0.0, %v1506
        %v1508 = vpop.f32.mrb[0].mxu0
        %1509 = vmatprep.mubr.f32.mxu0 0.0
        %1510 = vmatmul.mubr.f32.gmra.mrb[0].mxu0 %v1414
        %v1511 = vpop.f32.mrb[0].mxu0
        %v1512 = vadd.f32 0.0, %v1511
        %v1513 = vpop.f32.mrb[0].mxu0
        %1514 = vmatprep.mubr.f32.mxu0 0.0
        %1515 = vmatmul.mubr.f32.gmra.mrb[0].mxu0 %v1417
        %v1516 = vpop.f32.mrb[0].mxu0
        %v1517 = vadd.f32 0.0, %v1516
        %v1518 = vpop.f32.mrb[0].mxu0
        %1519 = vmatprep.mubr.f32.mxu0 0.0
        %1520 = vmatmul.mubr.f32.gmra.mrb[0].mxu0 %v1420
        %v1521 = vpop.f32.mrb[0].mxu0
        %v1522 = vadd.f32 0.0, %v1521
        %v1523 = vpop.f32.mrb[0].mxu0
        %1524 = vmatprep.mubr.f32.mxu0 0.0
        %1525 = vmatmul.mubr.f32.gmra.mrb[0].mxu0 %v1423
        %v1526 = vpop.f32.mrb[0].mxu0
        %v1527 = vadd.f32 0.0, %v1526
        %v1528 = vpop.f32.mrb[0].mxu0
        %1529 = vdwg.mxu0
        %s1530 = sld [smem:[#allocation4 + $0x4]]
        %v1531 = vstv %s1530
        %v1532 = vadd.f32 %v1492, %v1531
        %v1533 = vadd.f32 %v1497, %v1531
        %v1534 = vadd.f32 %v1502, %v1531
        %v1535 = vadd.f32 %v1507, %v1531
        %v1536 = vadd.f32 %v1512, %v1531
        %v1537 = vadd.f32 %v1517, %v1531
        %v1538 = vadd.f32 %v1522, %v1531
        %v1539 = vadd.f32 %v1527, %v1531
        %s1540 = sld [smem:[#allocation2 + $0x4]]
        %v1541 = vld [vmem:[%s325] sm:$0xff]
        %v1542 = vld [vmem:[%s325 + $0x8] sm:$0xff]
        %v1543 = vld [vmem:[%s325 + $0x10] sm:$0xff]
        %v1544 = vld [vmem:[%s325 + $0x18] sm:$0xff]
        %v1545 = vld [vmem:[%s325 + $0x20] sm:$0xff]
        %v1546 = vld [vmem:[%s325 + $0x28] sm:$0xff]
        %v1547 = vld [vmem:[%s325 + $0x30] sm:$0xff]
        %v1548 = vld [vmem:[%s325 + $0x38] sm:$0xff]
        %v1549 = vstv %s1540
        %v1550 = vmul.f32 %v1549, %v1541
        %v1551 = vmul.f32 %v1549, %v1542
        %v1552 = vmul.f32 %v1549, %v1543
        %v1553 = vmul.f32 %v1549, %v1544
        %v1554 = vmul.f32 %v1549, %v1545
        %v1555 = vmul.f32 %v1549, %v1546
        %v1556 = vmul.f32 %v1549, %v1547
        %v1557 = vmul.f32 %v1549, %v1548
        %v1558 = vadd.f32 %v1532, %v1550
        %v1559 = vadd.f32 %v1533, %v1551
        %v1560 = vadd.f32 %v1534, %v1552
        %v1561 = vadd.f32 %v1535, %v1553
        %v1562 = vadd.f32 %v1536, %v1554
        %v1563 = vadd.f32 %v1537, %v1555
        %v1564 = vadd.f32 %v1538, %v1556
        %v1565 = vadd.f32 %v1539, %v1557
        %s1566 = sld [smem:[#allocation2 + $0x84]]
        %v1567 = vld [vmem:[%s520] sm:$0xff]
        %v1568 = vld [vmem:[%s520 + $0x8] sm:$0xff]
        %v1569 = vld [vmem:[%s520 + $0x10] sm:$0xff]
        %v1570 = vld [vmem:[%s520 + $0x18] sm:$0xff]
        %v1571 = vld [vmem:[%s520 + $0x20] sm:$0xff]
        %v1572 = vld [vmem:[%s520 + $0x28] sm:$0xff]
        %v1573 = vld [vmem:[%s520 + $0x30] sm:$0xff]
        %v1574 = vld [vmem:[%s520 + $0x38] sm:$0xff]
        %v1575 = vstv %s1566
        %v1576 = vmul.f32 %v1575, %v1567
        %v1577 = vmul.f32 %v1575, %v1568
        %v1578 = vmul.f32 %v1575, %v1569
        %v1579 = vmul.f32 %v1575, %v1570
        %v1580 = vmul.f32 %v1575, %v1571
        %v1581 = vmul.f32 %v1575, %v1572
        %v1582 = vmul.f32 %v1575, %v1573
        %v1583 = vmul.f32 %v1575, %v1574
        %v1584 = vadd.f32 %v1558, %v1576
        %v1585 = vadd.f32 %v1559, %v1577
        %v1586 = vadd.f32 %v1560, %v1578
        %v1587 = vadd.f32 %v1561, %v1579
        %v1588 = vadd.f32 %v1562, %v1580
        %v1589 = vadd.f32 %v1563, %v1581
        %v1590 = vadd.f32 %v1564, %v1582
        %v1591 = vadd.f32 %v1565, %v1583
        %s1592 = sld [smem:[#allocation2 + $0x104]]
        %v1593 = vld [vmem:[%s547] sm:$0xff]
        %v1594 = vld [vmem:[%s547 + $0x8] sm:$0xff]
        %v1595 = vld [vmem:[%s547 + $0x10] sm:$0xff]
        %v1596 = vld [vmem:[%s547 + $0x18] sm:$0xff]
        %v1597 = vld [vmem:[%s547 + $0x20] sm:$0xff]
        %v1598 = vld [vmem:[%s547 + $0x28] sm:$0xff]
        %v1599 = vld [vmem:[%s547 + $0x30] sm:$0xff]
        %v1600 = vld [vmem:[%s547 + $0x38] sm:$0xff]
        %v1601 = vstv %s1592
        %v1602 = vmul.f32 %v1601, %v1593
        %v1603 = vmul.f32 %v1601, %v1594
        %v1604 = vmul.f32 %v1601, %v1595
        %v1605 = vmul.f32 %v1601, %v1596
        %v1606 = vmul.f32 %v1601, %v1597
        %v1607 = vmul.f32 %v1601, %v1598
        %v1608 = vmul.f32 %v1601, %v1599
        %v1609 = vmul.f32 %v1601, %v1600
        %v1610 = vadd.f32 %v1584, %v1602
        %v1611 = vadd.f32 %v1585, %v1603
        %v1612 = vadd.f32 %v1586, %v1604
        %v1613 = vadd.f32 %v1587, %v1605
        %v1614 = vadd.f32 %v1588, %v1606
        %v1615 = vadd.f32 %v1589, %v1607
        %v1616 = vadd.f32 %v1590, %v1608
        %v1617 = vadd.f32 %v1591, %v1609
        %s1618 = sld [smem:[#allocation2 + $0x184]]
        %v1619 = vld [vmem:[%s574] sm:$0xff]
        %v1620 = vld [vmem:[%s574 + $0x8] sm:$0xff]
        %v1621 = vld [vmem:[%s574 + $0x10] sm:$0xff]
        %v1622 = vld [vmem:[%s574 + $0x18] sm:$0xff]
        %v1623 = vld [vmem:[%s574 + $0x20] sm:$0xff]
        %v1624 = vld [vmem:[%s574 + $0x28] sm:$0xff]
        %v1625 = vld [vmem:[%s574 + $0x30] sm:$0xff]
        %v1626 = vld [vmem:[%s574 + $0x38] sm:$0xff]
        %v1627 = vstv %s1618
        %v1628 = vmul.f32 %v1627, %v1619
        %v1629 = vmul.f32 %v1627, %v1620
        %v1630 = vmul.f32 %v1627, %v1621
        %v1631 = vmul.f32 %v1627, %v1622
        %v1632 = vmul.f32 %v1627, %v1623
        %v1633 = vmul.f32 %v1627, %v1624
        %v1634 = vmul.f32 %v1627, %v1625
        %v1635 = vmul.f32 %v1627, %v1626
        %v1636 = vadd.f32 %v1610, %v1628
        %v1637 = vadd.f32 %v1611, %v1629
        %v1638 = vadd.f32 %v1612, %v1630
        %v1639 = vadd.f32 %v1613, %v1631
        %v1640 = vadd.f32 %v1614, %v1632
        %v1641 = vadd.f32 %v1615, %v1633
        %v1642 = vadd.f32 %v1616, %v1634
        %v1643 = vadd.f32 %v1617, %v1635
        %s1644 = scalar_lea.vmem %s337, 256
        %1645 = vst.msk [vmem:[%s1644] sm:$0xff] %vm600, %v1636
        %1646 = vst.msk [vmem:[%s1644 + $0x8] sm:$0xff] %vm600, %v1637
        %1647 = vst.msk [vmem:[%s1644 + $0x10] sm:$0xff] %vm600, %v1638
        %1648 = vst.msk [vmem:[%s1644 + $0x18] sm:$0xff] %vm600, %v1639
        %1649 = vst.msk [vmem:[%s1644 + $0x20] sm:$0xff] %vm600, %v1640
        %1650 = vst.msk [vmem:[%s1644 + $0x28] sm:$0xff] %vm600, %v1641
        %1651 = vst.msk [vmem:[%s1644 + $0x30] sm:$0xff] %vm600, %v1642
        %1652 = vst.msk [vmem:[%s1644 + $0x38] sm:$0xff] %vm600, %v1643
        %s1653 = smul.u32 5, %s22
        %s1654 = smul.u32 8, %s23
        %p1655 = scmp.lt.s32.totalorder %s1653, 9
        %s1656 = scalar_select %p1655, %s1653, 9
        %p1657 = scmp.lt.s32.totalorder %s1654, 7
        %s1658 = scalar_select %p1657, %s1654, 7
        %s1659 = smul.addr %s1656, 8
        %s1660 = sadd.s32 %s1658, %s1659
        %s1661 = smul.addr %s1660, 8
        %s1662 = scalar_lea.vmem %s5, %s1661
        // Predicated region
        $region49: #{_lambda_.3} parent=39 // pred_check
          %p1663 = pneg %p169
        $region50: #{_lambda_.3} parent=39 // pred_check_branch
          %1665 = sbr.rel (%p1663) target = $region52
        $region51: #{_lambda_.3} parent=39 // pred_region
          %s1666 = smul.u32 5, %s22
          %s1667 = smul.u32 8, %s23
        $region52: #{_lambda_.3} parent=39 // pred_fallthru
          _
      $region40: #{_lambda_.3} parent=5 // pred_fallthru
        _
      %p1668 = scmp.le.s32.totalorder 2, %s13
      // Predicated region
      $region53: #{_lambda_.3} parent=5 // pred_check
        %p1669 = pneg %p1668
      $region54: #{_lambda_.3} parent=5 // pred_check_branch
        %1671 = sbr.rel (%p1669) target = $region56
      $region55: #{_lambda_.3} parent=5 // pred_region
        %s1672 = ssub.s32 %s13, 2
        // Predicated region
        $region57: #{_lambda_.3} parent=55 // pred_check
          %p1673 = pneg %p175
        $region58: #{_lambda_.3} parent=55 // pred_check_branch
          %1675 = sbr.rel (%p1673) target = $region60
        $region59: #{_lambda_.3} parent=55 // pred_region
          %s1676 = smul.u32 5, %s24
          %s1677 = smul.u32 8, %s25
          %p1678 = scmp.lt.s32.totalorder %s1676, 9
          %s1679 = scalar_select %p1678, %s1676, 9
          %p1680 = scmp.lt.s32.totalorder %s1677, 7
          %s1681 = scalar_select %p1680, %s1677, 7
          %s1682 = smul.addr %s1679, 8
          %s1683 = sadd.s32 %s1681, %s1682
          %s1684 = smul.addr %s1683, 8
          %s1685 = scalar_lea.vmem %s5, %s1684
        $region60: #{_lambda_.3} parent=55 // pred_fallthru
          _
      $region56: #{_lambda_.3} parent=5 // pred_fallthru
        _
    $region6: #{_lambda_.3} parent=1 // loop_footer
      %s17 = sadd.s32 1, %s13
    $region7: #{_lambda_.3} parent=1 // loop_footer_branch
      %12 = sbr.rel target = $region3
    $region8: #{_lambda_.3} parent=1 // loop_exit
      _
    %1686 = vsyncpa [#allocation3], 1
    %s1687 = scalar_lea.sflag [#allocation3], 1
    %1688 = vsyncpa %s1687, 1
    %1689 = vsyncpa [#allocation5], 1

</llo_original>
